<compile_context>
chip_gen: v6e
topology: v6e:2x2x1
jax: 0.10.0
libtpu: 0.0.40
codegen_flags: <defaults>
</compile_context>

<pallas_src>
import jax
import jax.numpy as jnp
from jax import lax
from jax.experimental import pallas as pl
from jax.experimental.pallas import tpu as pltpu

_EPS = 1e-5


# ------------------------------- Pallas kernel -------------------------------


def _wide_block_kernel(x_ref, sdu_ref, s1_ref, t1_ref, m1_ref,
                       s2_ref, t2_ref, m2_ref, b2_ref, msk_ref, o_ref):
    """Fused: BN->relu->conv3x3 -> BN->relu->conv3x3 + 1x1 skip (stride=1)."""
    nb, h, wcin = x_ref.shape
    wc = o_ref.shape[-1]
    r = sdu_ref.shape[1]                            # rows per grid step (nb*H)
    f32 = jnp.float32

    x2 = x_ref[...].reshape(r, wcin)                # (R, W*Cin) lane-dense slab
    sdu = sdu_ref[...]                              # stacked [down; up] (2R, R)

    # ---- stage 1: norm_in (folded) -> relu -> conv_in (3x3, pad 1) ----------
    y1 = jnp.maximum(x2 * s1_ref[...] + t1_ref[...], 0.0)
    z1 = jnp.dot(sdu, y1, preferred_element_type=f32)       # rows h-1 / h+1
    h1 = (jnp.dot(z1[:r], m1_ref[0], preferred_element_type=f32)
          + jnp.dot(y1, m1_ref[1], preferred_element_type=f32)
          + jnp.dot(z1[r:], m1_ref[2], preferred_element_type=f32))
    # conv_in bias is folded into (s2, t2) on the host.

    # ---- stage 2: norm_out -> relu -> conv_out (3x3) + 1x1 skip on raw x ----
    y2 = jnp.maximum(h1 * s2_ref[...] + t2_ref[...], 0.0)
    z2 = jnp.dot(sdu, y2, preferred_element_type=f32)
    out = (jnp.dot(z2[:r], m2_ref[0], preferred_element_type=f32)
           + jnp.dot(y2, m2_ref[1], preferred_element_type=f32)
           + jnp.dot(z2[r:], m2_ref[2], preferred_element_type=f32)
           + jnp.dot(x2, msk_ref[...], preferred_element_type=f32)
           + b2_ref[...])

    o_ref[...] = out.reshape(nb, h, wc)


# ----------------------------- pallas_call glue -------------------------------


def _fused_wide_block(x2d, sdu, s1, t1, m1, s2, t2, m2, b2, msk, *, nb):
    n, h, wcin = x2d.shape
    wc = m1.shape[-1]
    r = sdu.shape[1]
    return pl.pallas_call(
        _wide_block_kernel,
        out_shape=jax.ShapeDtypeStruct((n, h, wc), jnp.float32),
        grid=(n // nb,),
        in_specs=[
            pl.BlockSpec((nb, h, wcin), lambda i: (i, 0, 0)),
            pl.BlockSpec((2 * r, r), lambda i: (0, 0)),
            pl.BlockSpec((1, wcin), lambda i: (0, 0)),
            pl.BlockSpec((1, wcin), lambda i: (0, 0)),
            pl.BlockSpec((3, wcin, wc), lambda i: (0, 0, 0)),
            pl.BlockSpec((1, wc), lambda i: (0, 0)),
            pl.BlockSpec((1, wc), lambda i: (0, 0)),
            pl.BlockSpec((3, wc, wc), lambda i: (0, 0, 0)),
            pl.BlockSpec((1, wc), lambda i: (0, 0)),
            pl.BlockSpec((wcin, wc), lambda i: (0, 0)),
        ],
        out_specs=pl.BlockSpec((nb, h, wc), lambda i: (i, 0, 0)),
        compiler_params=pltpu.CompilerParams(dimension_semantics=("parallel",)),
    )(x2d, sdu, s1, t1, m1, s2, t2, m2, b2, msk)


# --------------------------- weight re-packing (host) --------------------------


def _banded_conv_mats(w_conv, w_dim):
    """3x3 conv (OIHW weights) -> per-kh banded matrices (3, W*Cin, W*Cout).

    M_kh[w'*Cin+ci, w*Cout+co] = w_conv[co, ci, kh, kw] with kw = w'-w+1; the
    banded structure also realizes the W-boundary zero padding.
    """
    cout, cin = w_conv.shape[0], w_conv.shape[1]
    wt = jnp.transpose(w_conv, (2, 3, 1, 0)).astype(jnp.float32)  # (3,3,Cin,Cout)
    mats = []
    for kh in range(3):
        m = jnp.zeros((w_dim, cin, w_dim, cout), jnp.float32)
        for kw in range(3):
            e = jnp.eye(w_dim, k=1 - kw, dtype=jnp.float32)
            m = m + e[:, None, :, None] * wt[kh, kw][None, :, None, :]
        mats.append(m.reshape(w_dim * cin, w_dim * cout))
    return jnp.stack(mats, axis=0)


def _block_diag_1x1(w_skip, w_dim):
    """1x1 conv (OI11 weights) -> block-diagonal (W*Cin, W*Cout) matrix."""
    cout, cin = w_skip.shape[0], w_skip.shape[1]
    ws = jnp.transpose(w_skip[:, :, 0, 0], (1, 0)).astype(jnp.float32)  # (Cin,Cout)
    e = jnp.eye(w_dim, dtype=jnp.float32)
    return (e[:, None, :, None] * ws[None, :, None, :]).reshape(
        w_dim * cin, w_dim * cout)


def _shift_mats(nb, h):
    """Stacked 0/1 row-shift matrix [down; up] (no leakage across stacked images)."""
    r = nb * h
    ri = jnp.arange(r)[:, None]
    ci = jnp.arange(r)[None, :]
    down = ((ci == ri - 1) & (ri % h != 0)).astype(jnp.float32)       # row h-1
    up = ((ci == ri + 1) & (ri % h != h - 1)).astype(jnp.float32)     # row h+1
    return jnp.concatenate([down, up], axis=0)                        # (2R, R)


def _pick_nb(n):
    """Images per grid step: keep >= 2 parallel steps (v7x dual TC), cap at 8."""
    for nb in (8, 4, 2):
        if n % nb == 0 and n // nb >= 2:
            return nb
    return 1


# --------------------------- parameters & forward ------------------------------


def init_params(key, features_in, features):
    ks = jax.random.split(key, 14)
    p = {
        "gamma_in": 1.0 + 0.1 * jax.random.normal(ks[0], (features_in,)),
        "beta_in": 0.1 * jax.random.normal(ks[1], (features_in,)),
        "mean_in": 0.1 * jax.random.normal(ks[2], (features_in,)),
        "var_in": 0.5 + jax.random.uniform(ks[3], (features_in,)),
        "w_conv_in": 0.1 * jax.random.normal(ks[4], (features, features_in, 3, 3)),
        "b_conv_in": 0.05 * jax.random.normal(ks[5], (features,)),
        "gamma_out": 1.0 + 0.1 * jax.random.normal(ks[6], (features,)),
        "beta_out": 0.1 * jax.random.normal(ks[7], (features,)),
        "mean_out": 0.1 * jax.random.normal(ks[8], (features,)),
        "var_out": 0.5 + jax.random.uniform(ks[9], (features,)),
        "w_conv_out": 0.1 * jax.random.normal(ks[10], (features, features, 3, 3)),
        "b_conv_out": 0.05 * jax.random.normal(ks[11], (features,)),
        # skip conv (exists since expand_features=True)
        "w_skip": 0.1 * jax.random.normal(ks[12], (features, features_in, 1, 1)),
        "b_skip": 0.05 * jax.random.normal(ks[13], (features,)),
    }
    return {k: v.astype(jnp.float32) for k, v in p.items()}


def wide_block_forward(x_nchw, p, *, stride=1):
    if stride != 1:
        # TODO(synk): stride>1 output subsampling not implemented in the fused kernel.
        raise NotImplementedError("fused Pallas WideBlock implements stride=1 only")

    n, cin, h, w = x_nchw.shape
    cout = p["w_conv_in"].shape[0]

    # NCHW -> NHWC -> lane-dense (N, H, W*Cin) slabs.
    x = jnp.transpose(x_nchw, (0, 2, 3, 1)).astype(jnp.float32).reshape(n, h, w * cin)

    # Fold BatchNorm (eval mode) into per-channel scale/shift, tiled across W.
    scale_in = p["gamma_in"] / jnp.sqrt(p["var_in"] + _EPS)
    shift_in = p["beta_in"] - p["mean_in"] * scale_in
    scale_out = p["gamma_out"] / jnp.sqrt(p["var_out"] + _EPS)
    # Fold conv_in bias straight into the stage-2 affine: (h+b1)*s2+t2 = h*s2+(b1*s2+t2).
    shift_out = (p["beta_out"] - p["mean_out"] * scale_out
                 + p["b_conv_in"] * scale_out)

    m1 = _banded_conv_mats(p["w_conv_in"], w)      # (3, W*Cin,  W*Cout)
    m2 = _banded_conv_mats(p["w_conv_out"], w)     # (3, W*Cout, W*Cout)
    msk = _block_diag_1x1(p["w_skip"], w)          # (W*Cin, W*Cout)

    s1 = jnp.tile(scale_in, w).reshape(1, w * cin)
    t1 = jnp.tile(shift_in, w).reshape(1, w * cin)
    s2 = jnp.tile(scale_out, w).reshape(1, w * cout)
    t2 = jnp.tile(shift_out, w).reshape(1, w * cout)
    b2 = jnp.tile(p["b_conv_out"] + p["b_skip"], w).reshape(1, w * cout)

    nb = _pick_nb(n)
    sdu = _shift_mats(nb, h)                       # stacked [down; up] (2R, R)

    out = _fused_wide_block(x, sdu, s1, t1, m1, s2, t2, m2, b2, msk, nb=nb)
    out = out.reshape(n, h, w, cout)
    return jnp.transpose(out, (0, 3, 1, 2))        # NHWC -> NCHW


# ------------------------------ pure-JAX reference -----------------------------


def reference_forward(x_nchw, p, *, stride=1):
    def bn(x, g, b, m, v):
        return ((x - m[None, :, None, None]) /
                jnp.sqrt(v[None, :, None, None] + _EPS)
                * g[None, :, None, None] + b[None, :, None, None])

    def conv(x, w, b, s, pad):
        y = lax.conv_general_dilated(x, w, (s, s), [(pad, pad), (pad, pad)],
                                     dimension_numbers=("NCHW", "OIHW", "NCHW"),
                                     precision=lax.Precision.HIGHEST)
        return y + b[None, :, None, None]

    y = conv(jax.nn.relu(bn(x_nchw, p["gamma_in"], p["beta_in"],
                            p["mean_in"], p["var_in"])),
             p["w_conv_in"], p["b_conv_in"], 1, 1)
    y = conv(jax.nn.relu(bn(y, p["gamma_out"], p["beta_out"],
                            p["mean_out"], p["var_out"])),
             p["w_conv_out"], p["b_conv_out"], stride, 1)
    skip = conv(x_nchw, p["w_skip"], p["b_skip"], stride, 0)
    return y + skip


# ------------------------------------- main -------------------------------------


if __name__ == "__main__":
    features_in, features, stride = 4, 8, 1
    n, h, w = 2, 16, 16

    key = jax.random.PRNGKey(0)
    kx, kp = jax.random.split(key)
    x = jax.random.normal(kx, (n, features_in, h, w), dtype=jnp.float32)
    params = init_params(kp, features_in, features)

    fwd = jax.jit(wide_block_forward, static_argnames=("stride",))
    out = jax.block_until_ready(fwd(x, params, stride=stride))

    ref = reference_forward(x, params, stride=stride)
    assert out.shape == ref.shape, (out.shape, ref.shape)
    err = float(jnp.max(jnp.abs(out - ref)))
    # Kernel matmuls run at TPU-default MXU precision (bf16 inputs, f32 accum);
    # the reference uses Precision.HIGHEST, so allow ~1%.
    assert jnp.allclose(out, ref, atol=1e-2, rtol=1e-2), err
    print("KERNEL_OK")
</pallas_src>

<mosaic_0001>
module attributes {stable_mosaic.version = 11 : i64} {
  func.func @_wide_block_kernel(%arg0: i32, %arg1: memref<1x16x64xf32, #tpu.memory_space<vmem>>, %arg2: memref<32x16xf32, #tpu.memory_space<vmem>>, %arg3: memref<1x64xf32, #tpu.memory_space<vmem>>, %arg4: memref<1x64xf32, #tpu.memory_space<vmem>>, %arg5: memref<3x64x128xf32, #tpu.memory_space<vmem>>, %arg6: memref<1x128xf32, #tpu.memory_space<vmem>>, %arg7: memref<1x128xf32, #tpu.memory_space<vmem>>, %arg8: memref<3x128x128xf32, #tpu.memory_space<vmem>>, %arg9: memref<1x128xf32, #tpu.memory_space<vmem>>, %arg10: memref<64x128xf32, #tpu.memory_space<vmem>>, %arg11: memref<1x16x128xf32, #tpu.memory_space<vmem>>) attributes {dimension_semantics = [#tpu.dimension_semantics<parallel>], iteration_bounds = array<i64: 2>, scalar_prefetch = 0 : i64, scratch_operands = 0 : i64, tpu.core_type = #tpu.core_type<tc>, window_params = [{transform_indices = @transform_0, window_bounds = array<i64: 1, 16, 64>}, {pipeline_mode = #tpu.pipeline_mode<synchronous>, transform_indices = @transform_1, window_bounds = array<i64: 32, 16>}, {pipeline_mode = #tpu.pipeline_mode<synchronous>, transform_indices = @transform_2, window_bounds = array<i64: 1, 64>}, {pipeline_mode = #tpu.pipeline_mode<synchronous>, transform_indices = @transform_3, window_bounds = array<i64: 1, 64>}, {pipeline_mode = #tpu.pipeline_mode<synchronous>, transform_indices = @transform_4, window_bounds = array<i64: 3, 64, 128>}, {pipeline_mode = #tpu.pipeline_mode<synchronous>, transform_indices = @transform_5, window_bounds = array<i64: 1, 128>}, {pipeline_mode = #tpu.pipeline_mode<synchronous>, transform_indices = @transform_6, window_bounds = array<i64: 1, 128>}, {pipeline_mode = #tpu.pipeline_mode<synchronous>, transform_indices = @transform_7, window_bounds = array<i64: 3, 128, 128>}, {pipeline_mode = #tpu.pipeline_mode<synchronous>, transform_indices = @transform_8, window_bounds = array<i64: 1, 128>}, {pipeline_mode = #tpu.pipeline_mode<synchronous>, transform_indices = @transform_9, window_bounds = array<i64: 64, 128>}, {transform_indices = @transform_10, window_bounds = array<i64: 1, 16, 128>}]} {
    %c0 = arith.constant 0 : index
    %c0_0 = arith.constant 0 : index
    %c0_1 = arith.constant 0 : index
    %0 = vector.load %arg1[%c0, %c0_0, %c0_1] : memref<1x16x64xf32, #tpu.memory_space<vmem>>, vector<1x16x64xf32>
    %1 = vector.shape_cast %0 : vector<1x16x64xf32> to vector<16x64xf32>
    %c0_2 = arith.constant 0 : index
    %c0_3 = arith.constant 0 : index
    %2 = vector.load %arg2[%c0_2, %c0_3] : memref<32x16xf32, #tpu.memory_space<vmem>>, vector<32x16xf32>
    %c0_4 = arith.constant 0 : index
    %c0_5 = arith.constant 0 : index
    %3 = vector.load %arg3[%c0_4, %c0_5] : memref<1x64xf32, #tpu.memory_space<vmem>>, vector<1x64xf32>
    %4 = vector.broadcast %3 : vector<1x64xf32> to vector<16x64xf32>
    %5 = arith.mulf %1, %4 : vector<16x64xf32>
    %c0_6 = arith.constant 0 : index
    %c0_7 = arith.constant 0 : index
    %6 = vector.load %arg4[%c0_6, %c0_7] : memref<1x64xf32, #tpu.memory_space<vmem>>, vector<1x64xf32>
    %7 = vector.broadcast %6 : vector<1x64xf32> to vector<16x64xf32>
    %8 = arith.addf %5, %7 : vector<16x64xf32>
    %cst = arith.constant 0.000000e+00 : f32
    %9 = vector.broadcast %cst : f32 to vector<16x64xf32>
    %10 = arith.maximumf %8, %9 : vector<16x64xf32>
    %cst_8 = arith.constant dense<0.000000e+00> : vector<32x64xf32>
    %11 = tpu.matmul %2, %10, %cst_8 {dimension_numbers = #tpu.dot_dimension_numbers<[1], [0], [0], [1], [0, 0, 1, 1], [], []>} : vector<32x16xf32>, vector<16x64xf32>, vector<32x64xf32> -> vector<32x64xf32>
    %12 = vector.extract_strided_slice %11 {offsets = [0, 0], sizes = [16, 64], strides = [1, 1]} : vector<32x64xf32> to vector<16x64xf32>
    %c0_9 = arith.constant 0 : index
    %c0_10 = arith.constant 0 : index
    %c0_11 = arith.constant 0 : index
    %13 = vector.load %arg5[%c0_9, %c0_10, %c0_11] : memref<3x64x128xf32, #tpu.memory_space<vmem>>, vector<1x64x128xf32>
    %14 = vector.shape_cast %13 : vector<1x64x128xf32> to vector<64x128xf32>
    %cst_12 = arith.constant dense<0.000000e+00> : vector<16x128xf32>
    %15 = tpu.matmul %12, %14, %cst_12 {dimension_numbers = #tpu.dot_dimension_numbers<[1], [0], [0], [1], [0, 0, 1, 1], [], []>} : vector<16x64xf32>, vector<64x128xf32>, vector<16x128xf32> -> vector<16x128xf32>
    %c1 = arith.constant 1 : index
    %c0_13 = arith.constant 0 : index
    %c0_14 = arith.constant 0 : index
    %16 = vector.load %arg5[%c1, %c0_13, %c0_14] : memref<3x64x128xf32, #tpu.memory_space<vmem>>, vector<1x64x128xf32>
    %17 = vector.shape_cast %16 : vector<1x64x128xf32> to vector<64x128xf32>
    %cst_15 = arith.constant dense<0.000000e+00> : vector<16x128xf32>
    %18 = tpu.matmul %10, %17, %cst_15 {dimension_numbers = #tpu.dot_dimension_numbers<[1], [0], [0], [1], [0, 0, 1, 1], [], []>} : vector<16x64xf32>, vector<64x128xf32>, vector<16x128xf32> -> vector<16x128xf32>
    %19 = arith.addf %15, %18 : vector<16x128xf32>
    %20 = vector.extract_strided_slice %11 {offsets = [16, 0], sizes = [16, 64], strides = [1, 1]} : vector<32x64xf32> to vector<16x64xf32>
    %c2 = arith.constant 2 : index
    %c0_16 = arith.constant 0 : index
    %c0_17 = arith.constant 0 : index
    %21 = vector.load %arg5[%c2, %c0_16, %c0_17] : memref<3x64x128xf32, #tpu.memory_space<vmem>>, vector<1x64x128xf32>
    %22 = vector.shape_cast %21 : vector<1x64x128xf32> to vector<64x128xf32>
    %cst_18 = arith.constant dense<0.000000e+00> : vector<16x128xf32>
    %23 = tpu.matmul %20, %22, %cst_18 {dimension_numbers = #tpu.dot_dimension_numbers<[1], [0], [0], [1], [0, 0, 1, 1], [], []>} : vector<16x64xf32>, vector<64x128xf32>, vector<16x128xf32> -> vector<16x128xf32>
    %24 = arith.addf %19, %23 : vector<16x128xf32>
    %c0_19 = arith.constant 0 : index
    %c0_20 = arith.constant 0 : index
    %25 = vector.load %arg6[%c0_19, %c0_20] : memref<1x128xf32, #tpu.memory_space<vmem>>, vector<1x128xf32>
    %26 = vector.broadcast %25 : vector<1x128xf32> to vector<16x128xf32>
    %27 = arith.mulf %24, %26 : vector<16x128xf32>
    %c0_21 = arith.constant 0 : index
    %c0_22 = arith.constant 0 : index
    %28 = vector.load %arg7[%c0_21, %c0_22] : memref<1x128xf32, #tpu.memory_space<vmem>>, vector<1x128xf32>
    %29 = vector.broadcast %28 : vector<1x128xf32> to vector<16x128xf32>
    %30 = arith.addf %27, %29 : vector<16x128xf32>
    %cst_23 = arith.constant 0.000000e+00 : f32
    %31 = vector.broadcast %cst_23 : f32 to vector<16x128xf32>
    %32 = arith.maximumf %30, %31 : vector<16x128xf32>
    %cst_24 = arith.constant dense<0.000000e+00> : vector<32x128xf32>
    %33 = tpu.matmul %2, %32, %cst_24 {dimension_numbers = #tpu.dot_dimension_numbers<[1], [0], [0], [1], [0, 0, 1, 1], [], []>} : vector<32x16xf32>, vector<16x128xf32>, vector<32x128xf32> -> vector<32x128xf32>
    %34 = vector.extract_strided_slice %33 {offsets = [0, 0], sizes = [16, 128], strides = [1, 1]} : vector<32x128xf32> to vector<16x128xf32>
    %c0_25 = arith.constant 0 : index
    %c0_26 = arith.constant 0 : index
    %c0_27 = arith.constant 0 : index
    %35 = vector.load %arg8[%c0_25, %c0_26, %c0_27] : memref<3x128x128xf32, #tpu.memory_space<vmem>>, vector<1x128x128xf32>
    %36 = vector.shape_cast %35 : vector<1x128x128xf32> to vector<128x128xf32>
    %cst_28 = arith.constant dense<0.000000e+00> : vector<16x128xf32>
    %37 = tpu.matmul %34, %36, %cst_28 {dimension_numbers = #tpu.dot_dimension_numbers<[1], [0], [0], [1], [0, 0, 1, 1], [], []>} : vector<16x128xf32>, vector<128x128xf32>, vector<16x128xf32> -> vector<16x128xf32>
    %c1_29 = arith.constant 1 : index
    %c0_30 = arith.constant 0 : index
    %c0_31 = arith.constant 0 : index
    %38 = vector.load %arg8[%c1_29, %c0_30, %c0_31] : memref<3x128x128xf32, #tpu.memory_space<vmem>>, vector<1x128x128xf32>
    %39 = vector.shape_cast %38 : vector<1x128x128xf32> to vector<128x128xf32>
    %cst_32 = arith.constant dense<0.000000e+00> : vector<16x128xf32>
    %40 = tpu.matmul %32, %39, %cst_32 {dimension_numbers = #tpu.dot_dimension_numbers<[1], [0], [0], [1], [0, 0, 1, 1], [], []>} : vector<16x128xf32>, vector<128x128xf32>, vector<16x128xf32> -> vector<16x128xf32>
    %41 = arith.addf %37, %40 : vector<16x128xf32>
    %42 = vector.extract_strided_slice %33 {offsets = [16, 0], sizes = [16, 128], strides = [1, 1]} : vector<32x128xf32> to vector<16x128xf32>
    %c2_33 = arith.constant 2 : index
    %c0_34 = arith.constant 0 : index
    %c0_35 = arith.constant 0 : index
    %43 = vector.load %arg8[%c2_33, %c0_34, %c0_35] : memref<3x128x128xf32, #tpu.memory_space<vmem>>, vector<1x128x128xf32>
    %44 = vector.shape_cast %43 : vector<1x128x128xf32> to vector<128x128xf32>
    %cst_36 = arith.constant dense<0.000000e+00> : vector<16x128xf32>
    %45 = tpu.matmul %42, %44, %cst_36 {dimension_numbers = #tpu.dot_dimension_numbers<[1], [0], [0], [1], [0, 0, 1, 1], [], []>} : vector<16x128xf32>, vector<128x128xf32>, vector<16x128xf32> -> vector<16x128xf32>
    %46 = arith.addf %41, %45 : vector<16x128xf32>
    %c0_37 = arith.constant 0 : index
    %c0_38 = arith.constant 0 : index
    %47 = vector.load %arg10[%c0_37, %c0_38] : memref<64x128xf32, #tpu.memory_space<vmem>>, vector<64x128xf32>
    %cst_39 = arith.constant dense<0.000000e+00> : vector<16x128xf32>
    %48 = tpu.matmul %1, %47, %cst_39 {dimension_numbers = #tpu.dot_dimension_numbers<[1], [0], [0], [1], [0, 0, 1, 1], [], []>} : vector<16x64xf32>, vector<64x128xf32>, vector<16x128xf32> -> vector<16x128xf32>
    %49 = arith.addf %46, %48 : vector<16x128xf32>
    %c0_40 = arith.constant 0 : index
    %c0_41 = arith.constant 0 : index
    %50 = vector.load %arg9[%c0_40, %c0_41] : memref<1x128xf32, #tpu.memory_space<vmem>>, vector<1x128xf32>
    %51 = vector.broadcast %50 : vector<1x128xf32> to vector<16x128xf32>
    %52 = arith.addf %49, %51 : vector<16x128xf32>
    %53 = vector.shape_cast %52 : vector<16x128xf32> to vector<1x16x128xf32>
    %c0_42 = arith.constant 0 : index
    %c0_43 = arith.constant 0 : index
    %c0_44 = arith.constant 0 : index
    %54 = vector.load %arg11[%c0_42, %c0_43, %c0_44] : memref<1x16x128xf32, #tpu.memory_space<vmem>>, vector<1x16x128xf32>
    tpu.vector_store %arg11[%c0_42, %c0_43, %c0_44], %53 {strides = array<i32>} : memref<1x16x128xf32, #tpu.memory_space<vmem>>, vector<1x16x128xf32>,
    return
  }
  func.func @transform_0(%arg0: i32) -> (i32, i32, i32) {
    %c0_i32 = arith.constant 0 : i32
    %c0_i32_0 = arith.constant 0 : i32
    %c0_i32_1 = arith.constant 0 : i32
    return %arg0, %c0_i32, %c0_i32_0 : i32, i32, i32
  }
  func.func @transform_1(%arg0: i32) -> (i32, i32) {
    %c0_i32 = arith.constant 0 : i32
    %c0_i32_0 = arith.constant 0 : i32
    %c0_i32_1 = arith.constant 0 : i32
    return %c0_i32, %c0_i32_0 : i32, i32
  }
  func.func @transform_2(%arg0: i32) -> (i32, i32) {
    %c0_i32 = arith.constant 0 : i32
    %c0_i32_0 = arith.constant 0 : i32
    %c0_i32_1 = arith.constant 0 : i32
    return %c0_i32, %c0_i32_0 : i32, i32
  }
  func.func @transform_3(%arg0: i32) -> (i32, i32) {
    %c0_i32 = arith.constant 0 : i32
    %c0_i32_0 = arith.constant 0 : i32
    %c0_i32_1 = arith.constant 0 : i32
    return %c0_i32, %c0_i32_0 : i32, i32
  }
  func.func @transform_4(%arg0: i32) -> (i32, i32, i32) {
    %c0_i32 = arith.constant 0 : i32
    %c0_i32_0 = arith.constant 0 : i32
    %c0_i32_1 = arith.constant 0 : i32
    %c0_i32_2 = arith.constant 0 : i32
    return %c0_i32, %c0_i32_0, %c0_i32_1 : i32, i32, i32
  }
  func.func @transform_5(%arg0: i32) -> (i32, i32) {
    %c0_i32 = arith.constant 0 : i32
    %c0_i32_0 = arith.constant 0 : i32
    %c0_i32_1 = arith.constant 0 : i32
    return %c0_i32, %c0_i32_0 : i32, i32
  }
  func.func @transform_6(%arg0: i32) -> (i32, i32) {
    %c0_i32 = arith.constant 0 : i32
    %c0_i32_0 = arith.constant 0 : i32
    %c0_i32_1 = arith.constant 0 : i32
    return %c0_i32, %c0_i32_0 : i32, i32
  }
  func.func @transform_7(%arg0: i32) -> (i32, i32, i32) {
    %c0_i32 = arith.constant 0 : i32
    %c0_i32_0 = arith.constant 0 : i32
    %c0_i32_1 = arith.constant 0 : i32
    %c0_i32_2 = arith.constant 0 : i32
    return %c0_i32, %c0_i32_0, %c0_i32_1 : i32, i32, i32
  }
  func.func @transform_8(%arg0: i32) -> (i32, i32) {
    %c0_i32 = arith.constant 0 : i32
    %c0_i32_0 = arith.constant 0 : i32
    %c0_i32_1 = arith.constant 0 : i32
    return %c0_i32, %c0_i32_0 : i32, i32
  }
  func.func @transform_9(%arg0: i32) -> (i32, i32) {
    %c0_i32 = arith.constant 0 : i32
    %c0_i32_0 = arith.constant 0 : i32
    %c0_i32_1 = arith.constant 0 : i32
    return %c0_i32, %c0_i32_0 : i32, i32
  }
  func.func @transform_10(%arg0: i32) -> (i32, i32, i32) {
    %c0_i32 = arith.constant 0 : i32
    %c0_i32_0 = arith.constant 0 : i32
    %c0_i32_1 = arith.constant 0 : i32
    return %arg0, %c0_i32, %c0_i32_0 : i32, i32, i32
  }
}

</mosaic_0001>

<llo_original>
// kernel: tile.28
$region0: #{tile.28}
  #allocation0 [shape = 's32[1]{0}', space=sflag, size = 0x4, scoped, tag = 'scoped memory for tile.28']
  %s0 = inlined_call_operand.vmem [shape: f32[4], index: 0, kind: input, shape index: {}]
  %s1 = inlined_call_operand.vmem [shape: f32[16,4], index: 1, kind: output, shape index: {}]
  // Predicated region
  $region2: #{tile.28} parent=0 // pred_check
    _
  $region3: #{tile.28} parent=0 // pred_check_branch
    %3 = sbr.rel (0) target = $region5
  $region4: #{tile.28} parent=0 // pred_region
    _
  $region5: #{tile.28} parent=0 // pred_fallthru
    _
  %v4 = vld [vmem:[%s0] ss:$0 sm:$0xff]
  %5 = vst [vmem:[%s1] sm:$0xff] %v4
  %s6 = scalar_lea.vmem %s1, 8
  %7 = vst [vmem:[%s6] sm:$0xff] %v4

// kernel: tile.29
$region0: #{tile.29}
  %s0 = inlined_call_operand.vmem [shape: f32[16,4], index: 0, kind: input, shape index: {}]
  %s1 = inlined_call_operand.vmem [shape: f32[1,64], index: 1, kind: output, shape index: {}]
  $region1: #{tile.29} parent=0
    #allocation0 [shape = 'u8[4096]{0}', space=vmem, size = 0x1000, scoped, tag = 'scoped mem for output reshape']
    %v2 = vld [vmem:[%s0] sm:$0x1]
    %vm3 = vcmask 31744
    %4 = vst.msk [vmem:[#allocation0] sm:$0x1] %vm3, %v2
    %s5 = scalar_lea.vmem %s0, 15
    %v6 = vld [vmem:[%s5] sm:$0x1]
    %7 = vrot.lane.b32.xlu0 %v6, 60
    %v8 = vpop.permute.xlu0 %7
    %vm9 = vcmask 523744
    %10 = vst.msk [vmem:[#allocation0] sm:$0x1] %vm9, %v8
    %s11 = scalar_lea.vmem %s0, 14
    %v12 = vld [vmem:[%s11] sm:$0x1]
    %13 = vrot.lane.b32.xlu0 %v12, 56
    %v14 = vpop.permute.xlu0 %13
    %vm15 = vcmask 490944
    %16 = vst.msk [vmem:[#allocation0] sm:$0x1] %vm15, %v14
    %s17 = scalar_lea.vmem %s0, 13
    %v18 = vld [vmem:[%s17] sm:$0x1]
    %19 = vrot.lane.b32.xlu0 %v18, 52
    %v20 = vpop.permute.xlu0 %19
    %vm21 = vcmask 458144
    %22 = vst.msk [vmem:[#allocation0] sm:$0x1] %vm21, %v20
    %s23 = scalar_lea.vmem %s0, 12
    %v24 = vld [vmem:[%s23] sm:$0x1]
    %25 = vrot.lane.b32.xlu0 %v24, 48
    %v26 = vpop.permute.xlu0 %25
    %vm27 = vcmask 425344
    %28 = vst.msk [vmem:[#allocation0] sm:$0x1] %vm27, %v26
    %s29 = scalar_lea.vmem %s0, 11
    %v30 = vld [vmem:[%s29] sm:$0x1]
    %31 = vrot.lane.b32.xlu0 %v30, 44
    %v32 = vpop.permute.xlu0 %31
    %vm33 = vcmask 392544
    %34 = vst.msk [vmem:[#allocation0] sm:$0x1] %vm33, %v32
    %s35 = scalar_lea.vmem %s0, 10
    %v36 = vld [vmem:[%s35] sm:$0x1]
    %37 = vrot.lane.b32.xlu0 %v36, 40
    %v38 = vpop.permute.xlu0 %37
    %vm39 = vcmask 359744
    %40 = vst.msk [vmem:[#allocation0] sm:$0x1] %vm39, %v38
    %s41 = scalar_lea.vmem %s0, 9
    %v42 = vld [vmem:[%s41] sm:$0x1]
    %43 = vrot.lane.b32.xlu0 %v42, 36
    %v44 = vpop.permute.xlu0 %43
    %vm45 = vcmask 326944
    %46 = vst.msk [vmem:[#allocation0] sm:$0x1] %vm45, %v44
    %s47 = scalar_lea.vmem %s0, 8
    %v48 = vld [vmem:[%s47] sm:$0x1]
    %49 = vrot.lane.b32.xlu0 %v48, 32
    %v50 = vpop.permute.xlu0 %49
    %vm51 = vcmask 294144
    %52 = vst.msk [vmem:[#allocation0] sm:$0x1] %vm51, %v50
    %s53 = scalar_lea.vmem %s0, 7
    %v54 = vld [vmem:[%s53] sm:$0x1]
    %55 = vrot.lane.b32.xlu0 %v54, 28
    %v56 = vpop.permute.xlu0 %55
    %vm57 = vcmask 261344
    %58 = vst.msk [vmem:[#allocation0] sm:$0x1] %vm57, %v56
    %s59 = scalar_lea.vmem %s0, 6
    %v60 = vld [vmem:[%s59] sm:$0x1]
    %61 = vrot.lane.b32.xlu0 %v60, 24
    %v62 = vpop.permute.xlu0 %61
    %vm63 = vcmask 228544
    %64 = vst.msk [vmem:[#allocation0] sm:$0x1] %vm63, %v62
    %s65 = scalar_lea.vmem %s0, 5
    %v66 = vld [vmem:[%s65] sm:$0x1]
    %67 = vrot.lane.b32.xlu0 %v66, 20
    %v68 = vpop.permute.xlu0 %67
    %vm69 = vcmask 195744
    %70 = vst.msk [vmem:[#allocation0] sm:$0x1] %vm69, %v68
    %s71 = scalar_lea.vmem %s0, 4
    %v72 = vld [vmem:[%s71] sm:$0x1]
    %73 = vrot.lane.b32.xlu0 %v72, 16
    %v74 = vpop.permute.xlu0 %73
    %vm75 = vcmask 162944
    %76 = vst.msk [vmem:[#allocation0] sm:$0x1] %vm75, %v74
    %s77 = scalar_lea.vmem %s0, 3
    %v78 = vld [vmem:[%s77] sm:$0x1]
    %79 = vrot.lane.b32.xlu0 %v78, 12
    %v80 = vpop.permute.xlu0 %79
    %vm81 = vcmask 130144
    %82 = vst.msk [vmem:[#allocation0] sm:$0x1] %vm81, %v80
    %s83 = scalar_lea.vmem %s0, 2
    %v84 = vld [vmem:[%s83] sm:$0x1]
    %85 = vrot.lane.b32.xlu0 %v84, 8
    %v86 = vpop.permute.xlu0 %85
    %vm87 = vcmask 97344
    %88 = vst.msk [vmem:[#allocation0] sm:$0x1] %vm87, %v86
    %s89 = scalar_lea.vmem %s0, 1
    %v90 = vld [vmem:[%s89] sm:$0x1]
    %91 = vrot.lane.b32.xlu0 %v90, 4
    %v92 = vpop.permute.xlu0 %91
    %vm93 = vcmask 64544
    %94 = vst.msk [vmem:[#allocation0] sm:$0x1] %vm93, %v92
    %s96 = sshll.u32 1, 1
    %s97 = ssub.s32 %s96, 1
    %v99 = vld [vmem:[#allocation0] sm:%s97]
    %s100 = sshll.u32 1, 1
    %s101 = ssub.s32 %s100, 1
    %102 = vst [vmem:[%s1] sm:%s101] %v99

// kernel: tile.38
$region0: #{tile.38}
  #allocation0 [shape = 's32[1]{0}', space=sflag, size = 0x4, scoped, tag = 'scoped memory for tile.38']
  %s0 = inlined_call_operand.vmem [shape: f32[8], index: 0, kind: input, shape index: {}]
  %s1 = inlined_call_operand.vmem [shape: f32[16,8], index: 1, kind: output, shape index: {}]
  // Predicated region
  $region2: #{tile.38} parent=0 // pred_check
    _
  $region3: #{tile.38} parent=0 // pred_check_branch
    %3 = sbr.rel (0) target = $region5
  $region4: #{tile.38} parent=0 // pred_region
    _
  $region5: #{tile.38} parent=0 // pred_fallthru
    _
  %v4 = vld [vmem:[%s0] ss:$0 sm:$0xff]
  %5 = vst [vmem:[%s1] sm:$0xff] %v4
  %s6 = scalar_lea.vmem %s1, 8
  %7 = vst [vmem:[%s6] sm:$0xff] %v4

// kernel: tile.39
$region0: #{tile.39}
  %s0 = inlined_call_operand.vmem [shape: f32[16,8], index: 0, kind: input, shape index: {}]
  %s1 = inlined_call_operand.vmem [shape: f32[1,128], index: 1, kind: output, shape index: {}]
  $region1: #{tile.39} parent=0
    #allocation0 [shape = 'u8[4096]{0}', space=vmem, size = 0x1000, scoped, tag = 'scoped mem for output reshape']
    %v2 = vld [vmem:[%s0] sm:$0x1]
    %vm3 = vcmask 64512
    %4 = vst.msk [vmem:[#allocation0] sm:$0x1] %vm3, %v2
    %s5 = scalar_lea.vmem %s0, 15
    %v6 = vld [vmem:[%s5] sm:$0x1]
    %7 = vrot.lane.b32.xlu0 %v6, 120
    %v8 = vpop.permute.xlu0 %7
    %vm9 = vcmask 1048512
    %10 = vst.msk [vmem:[#allocation0] sm:$0x1] %vm9, %v8
    %s11 = scalar_lea.vmem %s0, 14
    %v12 = vld [vmem:[%s11] sm:$0x1]
    %13 = vrot.lane.b32.xlu0 %v12, 112
    %v14 = vpop.permute.xlu0 %13
    %vm15 = vcmask 982912
    %16 = vst.msk [vmem:[#allocation0] sm:$0x1] %vm15, %v14
    %s17 = scalar_lea.vmem %s0, 13
    %v18 = vld [vmem:[%s17] sm:$0x1]
    %19 = vrot.lane.b32.xlu0 %v18, 104
    %v20 = vpop.permute.xlu0 %19
    %vm21 = vcmask 917312
    %22 = vst.msk [vmem:[#allocation0] sm:$0x1] %vm21, %v20
    %s23 = scalar_lea.vmem %s0, 12
    %v24 = vld [vmem:[%s23] sm:$0x1]
    %25 = vrot.lane.b32.xlu0 %v24, 96
    %v26 = vpop.permute.xlu0 %25
    %vm27 = vcmask 851712
    %28 = vst.msk [vmem:[#allocation0] sm:$0x1] %vm27, %v26
    %s29 = scalar_lea.vmem %s0, 11
    %v30 = vld [vmem:[%s29] sm:$0x1]
    %31 = vrot.lane.b32.xlu0 %v30, 88
    %v32 = vpop.permute.xlu0 %31
    %vm33 = vcmask 786112
    %34 = vst.msk [vmem:[#allocation0] sm:$0x1] %vm33, %v32
    %s35 = scalar_lea.vmem %s0, 10
    %v36 = vld [vmem:[%s35] sm:$0x1]
    %37 = vrot.lane.b32.xlu0 %v36, 80
    %v38 = vpop.permute.xlu0 %37
    %vm39 = vcmask 720512
    %40 = vst.msk [vmem:[#allocation0] sm:$0x1] %vm39, %v38
    %s41 = scalar_lea.vmem %s0, 9
    %v42 = vld [vmem:[%s41] sm:$0x1]
    %43 = vrot.lane.b32.xlu0 %v42, 72
    %v44 = vpop.permute.xlu0 %43
    %vm45 = vcmask 654912
    %46 = vst.msk [vmem:[#allocation0] sm:$0x1] %vm45, %v44
    %s47 = scalar_lea.vmem %s0, 8
    %v48 = vld [vmem:[%s47] sm:$0x1]
    %49 = vrot.lane.b32.xlu0 %v48, 64
    %v50 = vpop.permute.xlu0 %49
    %vm51 = vcmask 589312
    %52 = vst.msk [vmem:[#allocation0] sm:$0x1] %vm51, %v50
    %s53 = scalar_lea.vmem %s0, 7
    %v54 = vld [vmem:[%s53] sm:$0x1]
    %55 = vrot.lane.b32.xlu0 %v54, 56
    %v56 = vpop.permute.xlu0 %55
    %vm57 = vcmask 523712
    %58 = vst.msk [vmem:[#allocation0] sm:$0x1] %vm57, %v56
    %s59 = scalar_lea.vmem %s0, 6
    %v60 = vld [vmem:[%s59] sm:$0x1]
    %61 = vrot.lane.b32.xlu0 %v60, 48
    %v62 = vpop.permute.xlu0 %61
    %vm63 = vcmask 458112
    %64 = vst.msk [vmem:[#allocation0] sm:$0x1] %vm63, %v62
    %s65 = scalar_lea.vmem %s0, 5
    %v66 = vld [vmem:[%s65] sm:$0x1]
    %67 = vrot.lane.b32.xlu0 %v66, 40
    %v68 = vpop.permute.xlu0 %67
    %vm69 = vcmask 392512
    %70 = vst.msk [vmem:[#allocation0] sm:$0x1] %vm69, %v68
    %s71 = scalar_lea.vmem %s0, 4
    %v72 = vld [vmem:[%s71] sm:$0x1]
    %73 = vrot.lane.b32.xlu0 %v72, 32
    %v74 = vpop.permute.xlu0 %73
    %vm75 = vcmask 326912
    %76 = vst.msk [vmem:[#allocation0] sm:$0x1] %vm75, %v74
    %s77 = scalar_lea.vmem %s0, 3
    %v78 = vld [vmem:[%s77] sm:$0x1]
    %79 = vrot.lane.b32.xlu0 %v78, 24
    %v80 = vpop.permute.xlu0 %79
    %vm81 = vcmask 261312
    %82 = vst.msk [vmem:[#allocation0] sm:$0x1] %vm81, %v80
    %s83 = scalar_lea.vmem %s0, 2
    %v84 = vld [vmem:[%s83] sm:$0x1]
    %85 = vrot.lane.b32.xlu0 %v84, 16
    %v86 = vpop.permute.xlu0 %85
    %vm87 = vcmask 195712
    %88 = vst.msk [vmem:[#allocation0] sm:$0x1] %vm87, %v86
    %s89 = scalar_lea.vmem %s0, 1
    %v90 = vld [vmem:[%s89] sm:$0x1]
    %91 = vrot.lane.b32.xlu0 %v90, 8
    %v92 = vpop.permute.xlu0 %91
    %vm93 = vcmask 130112
    %94 = vst.msk [vmem:[#allocation0] sm:$0x1] %vm93, %v92
    %s96 = sshll.u32 1, 1
    %s97 = ssub.s32 %s96, 1
    %v99 = vld [vmem:[#allocation0] sm:%s97]
    %s100 = sshll.u32 1, 1
    %s101 = ssub.s32 %s100, 1
    %102 = vst [vmem:[%s1] sm:%s101] %v99

// kernel: wide_block_forward.1
$region0: #{wide_block_forward.1}
  #allocation0 [shape = 'u32[]', space=smem, size = 0x4, offset = 0x4, fixed_abs, tag = 'smem constant byte address 0x4 - core index']
  #allocation1 [shape = 'u32[144,128]{1,0:T(1,128)}', space=vmem, size = 0x12000, scoped, tag = 'internal scratch']
  %s0 = inlined_call_operand.vmem [shape: f32[2,16,64], index: 0, kind: input, shape index: {}]
  %s1 = inlined_call_operand.vmem [shape: f32[32,16], index: 1, kind: input, shape index: {}]
  %s2 = inlined_call_operand.vmem [shape: f32[1,64], index: 2, kind: input, shape index: {}]
  %s3 = inlined_call_operand.vmem [shape: f32[1,64], index: 3, kind: input, shape index: {}]
  %s4 = inlined_call_operand.vmem [shape: f32[3,64,128], index: 4, kind: input, shape index: {}]
  %s5 = inlined_call_operand.vmem [shape: f32[1,128], index: 5, kind: input, shape index: {}]
  %s6 = inlined_call_operand.vmem [shape: f32[1,128], index: 6, kind: input, shape index: {}]
  %s7 = inlined_call_operand.vmem [shape: f32[3,128,128], index: 7, kind: input, shape index: {}]
  %s8 = inlined_call_operand.vmem [shape: f32[1,128], index: 8, kind: input, shape index: {}]
  %s9 = inlined_call_operand.vmem [shape: f32[64,128], index: 9, kind: input, shape index: {}]
  %s10 = inlined_call_operand.vmem [shape: f32[2,16,128], index: 10, kind: output, shape index: {}]
  %s11 = sld [smem:[#allocation0]]
  $region73: #{wide_block_forward.1} parent=0
    _
  %s13 = ssub.s32 1, %s11
  %s14 = scalar_select 0, %s13, %s11
  loop: start=0, step=1, limit=4
  $region2: #{wide_block_forward.1} parent=0 // loop_pre_header
    _
  $region3: #{wide_block_forward.1} parent=0 // loop_header
    %s16 = sphi 0, %s20
    %p17 = scmp.ge.s32.totalorder %s16, 4
    %s26 = sphi 0, %s28
    %s29 = sphi 0, %s26
    %s30 = sphi 0, %s29
    %s46 = sphi 0, %s30
    %s50 = sphi 0, %s50
    %s52 = sphi 0, %s50
    %s53 = sphi 0, %s52
    %s67 = sphi 0, %s53
    %s71 = sphi 0, %s71
    %s73 = sphi 0, %s71
    %s74 = sphi 0, %s73
    %s88 = sphi 0, %s74
    %s92 = sphi 0, %s92
    %s94 = sphi 0, %s92
    %s95 = sphi 0, %s94
    %s109 = sphi 0, %s95
    %s113 = sphi 0, %s113
    %s115 = sphi 0, %s113
    %s116 = sphi 0, %s115
    %s130 = sphi 0, %s116
    %s134 = sphi 0, %s134
    %s136 = sphi 0, %s134
    %s137 = sphi 0, %s136
    %s151 = sphi 0, %s137
    %s155 = sphi 0, %s155
    %s157 = sphi 0, %s155
    %s158 = sphi 0, %s157
    %s172 = sphi 0, %s158
    %s176 = sphi 0, %s176
    %s178 = sphi 0, %s176
    %s179 = sphi 0, %s178
    %s193 = sphi 0, %s179
    %s197 = sphi 0, %s197
    %s199 = sphi 0, %s197
    %s200 = sphi 0, %s199
    %s214 = sphi 0, %s200
    %s218 = sphi 0, %s218
    %s220 = sphi 0, %s218
    %s221 = sphi 0, %s220
    %s235 = sphi 0, %s221
    %s241 = sphi 0, %s243
    %s244 = sphi 0, %s241
    %s245 = sphi 0, %s244
    %s261 = sphi 0, %s245
  $region4: #{wide_block_forward.1} parent=0 // loop_header_branch
    %19 = sbr.rel (%p17) target = $region8
  $region5: #{wide_block_forward.1} parent=0 // loop_body
    %s21 = ssub.s32 %s16, 1
    %s22 = ssub.s32 %s16, 2
    %s23 = sadd.s32 %s16, 1
    %s24 = ssub.s32 %s16, %s23
    %p25 = scmp.eq.s32.totalorder %s24, 0
    %s27 = sadd.s32 %s26, 1
    %s28 = scalar_select %p25, %s26, %s27
    %p31 = pneg %p25
    %p32 = scmp.eq.s32.totalorder %s16, 1
    %p33 = por %p31, %p32
    %p34 = scmp.ne.s32.totalorder %s26, %s29
    %p35 = scmp.eq.s32.totalorder %s16, 0
    %p36 = por %p34, %p35
    %p37 = scmp.ne.s32.totalorder %s26, %s29
    %p38 = scmp.eq.s32.totalorder %s21, 1
    %p39 = por %p37, %p38
    %p40 = scmp.ne.s32.totalorder %s29, %s30
    %p41 = scmp.eq.s32.totalorder %s21, 0
    %p42 = por %p40, %p41
    %p43 = scmp.ne.s32.totalorder %s29, %s30
    %p44 = scmp.eq.s32.totalorder %s22, 1
    %p45 = por %p43, %p44
    %p47 = scmp.ne.s32.totalorder %s30, %s46
    %p48 = scmp.eq.s32.totalorder %s22, 0
    %p49 = por %p47, %p48
    %s51 = sadd.s32 %s50, 1
    %p54 = scmp.eq.s32.totalorder %s16, 1
    %p55 = scmp.ne.s32.totalorder %s50, %s52
    %p56 = scmp.eq.s32.totalorder %s16, 0
    %p57 = por %p55, %p56
    %p58 = scmp.ne.s32.totalorder %s50, %s52
    %p59 = scmp.eq.s32.totalorder %s21, 1
    %p60 = por %p58, %p59
    %p61 = scmp.ne.s32.totalorder %s52, %s53
    %p62 = scmp.eq.s32.totalorder %s21, 0
    %p63 = por %p61, %p62
    %p64 = scmp.ne.s32.totalorder %s52, %s53
    %p65 = scmp.eq.s32.totalorder %s22, 1
    %p66 = por %p64, %p65
    %p68 = scmp.ne.s32.totalorder %s53, %s67
    %p69 = scmp.eq.s32.totalorder %s22, 0
    %p70 = por %p68, %p69
    %s72 = sadd.s32 %s71, 1
    %p75 = scmp.eq.s32.totalorder %s16, 1
    %p76 = scmp.ne.s32.totalorder %s71, %s73
    %p77 = scmp.eq.s32.totalorder %s16, 0
    %p78 = por %p76, %p77
    %p79 = scmp.ne.s32.totalorder %s71, %s73
    %p80 = scmp.eq.s32.totalorder %s21, 1
    %p81 = por %p79, %p80
    %p82 = scmp.ne.s32.totalorder %s73, %s74
    %p83 = scmp.eq.s32.totalorder %s21, 0
    %p84 = por %p82, %p83
    %p85 = scmp.ne.s32.totalorder %s73, %s74
    %p86 = scmp.eq.s32.totalorder %s22, 1
    %p87 = por %p85, %p86
    %p89 = scmp.ne.s32.totalorder %s74, %s88
    %p90 = scmp.eq.s32.totalorder %s22, 0
    %p91 = por %p89, %p90
    %s93 = sadd.s32 %s92, 1
    %p96 = scmp.eq.s32.totalorder %s16, 1
    %p97 = scmp.ne.s32.totalorder %s92, %s94
    %p98 = scmp.eq.s32.totalorder %s16, 0
    %p99 = por %p97, %p98
    %p100 = scmp.ne.s32.totalorder %s92, %s94
    %p101 = scmp.eq.s32.totalorder %s21, 1
    %p102 = por %p100, %p101
    %p103 = scmp.ne.s32.totalorder %s94, %s95
    %p104 = scmp.eq.s32.totalorder %s21, 0
    %p105 = por %p103, %p104
    %p106 = scmp.ne.s32.totalorder %s94, %s95
    %p107 = scmp.eq.s32.totalorder %s22, 1
    %p108 = por %p106, %p107
    %p110 = scmp.ne.s32.totalorder %s95, %s109
    %p111 = scmp.eq.s32.totalorder %s22, 0
    %p112 = por %p110, %p111
    %s114 = sadd.s32 %s113, 1
    %p117 = scmp.eq.s32.totalorder %s16, 1
    %p118 = scmp.ne.s32.totalorder %s113, %s115
    %p119 = scmp.eq.s32.totalorder %s16, 0
    %p120 = por %p118, %p119
    %p121 = scmp.ne.s32.totalorder %s113, %s115
    %p122 = scmp.eq.s32.totalorder %s21, 1
    %p123 = por %p121, %p122
    %p124 = scmp.ne.s32.totalorder %s115, %s116
    %p125 = scmp.eq.s32.totalorder %s21, 0
    %p126 = por %p124, %p125
    %p127 = scmp.ne.s32.totalorder %s115, %s116
    %p128 = scmp.eq.s32.totalorder %s22, 1
    %p129 = por %p127, %p128
    %p131 = scmp.ne.s32.totalorder %s116, %s130
    %p132 = scmp.eq.s32.totalorder %s22, 0
    %p133 = por %p131, %p132
    %s135 = sadd.s32 %s134, 1
    %p138 = scmp.eq.s32.totalorder %s16, 1
    %p139 = scmp.ne.s32.totalorder %s134, %s136
    %p140 = scmp.eq.s32.totalorder %s16, 0
    %p141 = por %p139, %p140
    %p142 = scmp.ne.s32.totalorder %s134, %s136
    %p143 = scmp.eq.s32.totalorder %s21, 1
    %p144 = por %p142, %p143
    %p145 = scmp.ne.s32.totalorder %s136, %s137
    %p146 = scmp.eq.s32.totalorder %s21, 0
    %p147 = por %p145, %p146
    %p148 = scmp.ne.s32.totalorder %s136, %s137
    %p149 = scmp.eq.s32.totalorder %s22, 1
    %p150 = por %p148, %p149
    %p152 = scmp.ne.s32.totalorder %s137, %s151
    %p153 = scmp.eq.s32.totalorder %s22, 0
    %p154 = por %p152, %p153
    %s156 = sadd.s32 %s155, 1
    %p159 = scmp.eq.s32.totalorder %s16, 1
    %p160 = scmp.ne.s32.totalorder %s155, %s157
    %p161 = scmp.eq.s32.totalorder %s16, 0
    %p162 = por %p160, %p161
    %p163 = scmp.ne.s32.totalorder %s155, %s157
    %p164 = scmp.eq.s32.totalorder %s21, 1
    %p165 = por %p163, %p164
    %p166 = scmp.ne.s32.totalorder %s157, %s158
    %p167 = scmp.eq.s32.totalorder %s21, 0
    %p168 = por %p166, %p167
    %p169 = scmp.ne.s32.totalorder %s157, %s158
    %p170 = scmp.eq.s32.totalorder %s22, 1
    %p171 = por %p169, %p170
    %p173 = scmp.ne.s32.totalorder %s158, %s172
    %p174 = scmp.eq.s32.totalorder %s22, 0
    %p175 = por %p173, %p174
    %s177 = sadd.s32 %s176, 1
    %p180 = scmp.eq.s32.totalorder %s16, 1
    %p181 = scmp.ne.s32.totalorder %s176, %s178
    %p182 = scmp.eq.s32.totalorder %s16, 0
    %p183 = por %p181, %p182
    %p184 = scmp.ne.s32.totalorder %s176, %s178
    %p185 = scmp.eq.s32.totalorder %s21, 1
    %p186 = por %p184, %p185
    %p187 = scmp.ne.s32.totalorder %s178, %s179
    %p188 = scmp.eq.s32.totalorder %s21, 0
    %p189 = por %p187, %p188
    %p190 = scmp.ne.s32.totalorder %s178, %s179
    %p191 = scmp.eq.s32.totalorder %s22, 1
    %p192 = por %p190, %p191
    %p194 = scmp.ne.s32.totalorder %s179, %s193
    %p195 = scmp.eq.s32.totalorder %s22, 0
    %p196 = por %p194, %p195
    %s198 = sadd.s32 %s197, 1
    %p201 = scmp.eq.s32.totalorder %s16, 1
    %p202 = scmp.ne.s32.totalorder %s197, %s199
    %p203 = scmp.eq.s32.totalorder %s16, 0
    %p204 = por %p202, %p203
    %p205 = scmp.ne.s32.totalorder %s197, %s199
    %p206 = scmp.eq.s32.totalorder %s21, 1
    %p207 = por %p205, %p206
    %p208 = scmp.ne.s32.totalorder %s199, %s200
    %p209 = scmp.eq.s32.totalorder %s21, 0
    %p210 = por %p208, %p209
    %p211 = scmp.ne.s32.totalorder %s199, %s200
    %p212 = scmp.eq.s32.totalorder %s22, 1
    %p213 = por %p211, %p212
    %p215 = scmp.ne.s32.totalorder %s200, %s214
    %p216 = scmp.eq.s32.totalorder %s22, 0
    %p217 = por %p215, %p216
    %s219 = sadd.s32 %s218, 1
    %p222 = scmp.eq.s32.totalorder %s16, 1
    %p223 = scmp.ne.s32.totalorder %s218, %s220
    %p224 = scmp.eq.s32.totalorder %s16, 0
    %p225 = por %p223, %p224
    %p226 = scmp.ne.s32.totalorder %s218, %s220
    %p227 = scmp.eq.s32.totalorder %s21, 1
    %p228 = por %p226, %p227
    %p229 = scmp.ne.s32.totalorder %s220, %s221
    %p230 = scmp.eq.s32.totalorder %s21, 0
    %p231 = por %p229, %p230
    %p232 = scmp.ne.s32.totalorder %s220, %s221
    %p233 = scmp.eq.s32.totalorder %s22, 1
    %p234 = por %p232, %p233
    %p236 = scmp.ne.s32.totalorder %s221, %s235
    %p237 = scmp.eq.s32.totalorder %s22, 0
    %p238 = por %p236, %p237
    %s239 = ssub.s32 %s16, %s23
    %p240 = scmp.eq.s32.totalorder %s239, 0
    %s242 = sadd.s32 %s241, 1
    %s243 = scalar_select %p240, %s241, %s242
    %p246 = pneg %p240
    %p247 = scmp.eq.s32.totalorder %s16, 1
    %p248 = por %p246, %p247
    %p249 = scmp.ne.s32.totalorder %s241, %s244
    %p250 = scmp.eq.s32.totalorder %s16, 0
    %p251 = por %p249, %p250
    %p252 = scmp.ne.s32.totalorder %s241, %s244
    %p253 = scmp.eq.s32.totalorder %s21, 1
    %p254 = por %p252, %p253
    %p255 = scmp.ne.s32.totalorder %s244, %s245
    %p256 = scmp.eq.s32.totalorder %s21, 0
    %p257 = por %p255, %p256
    %p258 = scmp.ne.s32.totalorder %s244, %s245
    %p259 = scmp.eq.s32.totalorder %s22, 1
    %p260 = por %p258, %p259
    %p262 = scmp.ne.s32.totalorder %s245, %s261
    %p263 = scmp.eq.s32.totalorder %s22, 0
    %p264 = por %p262, %p263
    %p265 = scmp.le.s32.totalorder 1, %s16
    %p266 = scmp.lt.s32.totalorder %s16, 3
    %p267 = pnand %p265, %p266
    %p268 = pneg %p267
    // Predicated region
    $region9: #{wide_block_forward.1} parent=5 // pred_check
      _
    $region10: #{wide_block_forward.1} parent=5 // pred_check_branch
      %270 = sbr.rel (%p267) target = $region12
    $region11: #{wide_block_forward.1} parent=5 // pred_region
      %s271 = ssub.s32 %s16, 1
      // Predicated region
      $region13: #{wide_block_forward.1} parent=11 // pred_check
        %p272 = pneg %p63
      $region14: #{wide_block_forward.1} parent=11 // pred_check_branch
        %274 = sbr.rel (%p272) target = $region16
      $region15: #{wide_block_forward.1} parent=11 // pred_region
        _
      $region16: #{wide_block_forward.1} parent=11 // pred_fallthru
        _
      // Predicated region
      $region17: #{wide_block_forward.1} parent=11 // pred_check
        %p275 = pneg %p84
      $region18: #{wide_block_forward.1} parent=11 // pred_check_branch
        %277 = sbr.rel (%p275) target = $region20
      $region19: #{wide_block_forward.1} parent=11 // pred_region
        _
      $region20: #{wide_block_forward.1} parent=11 // pred_fallthru
        _
      // Predicated region
      $region21: #{wide_block_forward.1} parent=11 // pred_check
        %p278 = pneg %p105
      $region22: #{wide_block_forward.1} parent=11 // pred_check_branch
        %280 = sbr.rel (%p278) target = $region24
      $region23: #{wide_block_forward.1} parent=11 // pred_region
        _
      $region24: #{wide_block_forward.1} parent=11 // pred_fallthru
        _
      // Predicated region
      $region25: #{wide_block_forward.1} parent=11 // pred_check
        %p281 = pneg %p126
      $region26: #{wide_block_forward.1} parent=11 // pred_check_branch
        %283 = sbr.rel (%p281) target = $region28
      $region27: #{wide_block_forward.1} parent=11 // pred_region
        _
      $region28: #{wide_block_forward.1} parent=11 // pred_fallthru
        _
      // Predicated region
      $region29: #{wide_block_forward.1} parent=11 // pred_check
        %p284 = pneg %p147
      $region30: #{wide_block_forward.1} parent=11 // pred_check_branch
        %286 = sbr.rel (%p284) target = $region32
      $region31: #{wide_block_forward.1} parent=11 // pred_region
        _
      $region32: #{wide_block_forward.1} parent=11 // pred_fallthru
        _
      // Predicated region
      $region33: #{wide_block_forward.1} parent=11 // pred_check
        %p287 = pneg %p168
      $region34: #{wide_block_forward.1} parent=11 // pred_check_branch
        %289 = sbr.rel (%p287) target = $region36
      $region35: #{wide_block_forward.1} parent=11 // pred_region
        _
      $region36: #{wide_block_forward.1} parent=11 // pred_fallthru
        _
      // Predicated region
      $region37: #{wide_block_forward.1} parent=11 // pred_check
        %p290 = pneg %p189
      $region38: #{wide_block_forward.1} parent=11 // pred_check_branch
        %292 = sbr.rel (%p290) target = $region40
      $region39: #{wide_block_forward.1} parent=11 // pred_region
        _
      $region40: #{wide_block_forward.1} parent=11 // pred_fallthru
        _
      // Predicated region
      $region41: #{wide_block_forward.1} parent=11 // pred_check
        %p293 = pneg %p210
      $region42: #{wide_block_forward.1} parent=11 // pred_check_branch
        %295 = sbr.rel (%p293) target = $region44
      $region43: #{wide_block_forward.1} parent=11 // pred_region
        _
      $region44: #{wide_block_forward.1} parent=11 // pred_fallthru
        _
      // Predicated region
      $region45: #{wide_block_forward.1} parent=11 // pred_check
        %p296 = pneg %p231
      $region46: #{wide_block_forward.1} parent=11 // pred_check_branch
        %298 = sbr.rel (%p296) target = $region48
      $region47: #{wide_block_forward.1} parent=11 // pred_region
        _
      $region48: #{wide_block_forward.1} parent=11 // pred_fallthru
        _
    $region12: #{wide_block_forward.1} parent=5 // pred_fallthru
      _
    %p299 = scmp.lt.s32.totalorder %s16, 2
    // Predicated region
    $region49: #{wide_block_forward.1} parent=5 // pred_check
      %p300 = pneg %p299
    $region50: #{wide_block_forward.1} parent=5 // pred_check_branch
      %302 = sbr.rel (%p300) target = $region52
    $region51: #{wide_block_forward.1} parent=5 // pred_region
      // Predicated region
      $region53: #{wide_block_forward.1} parent=51 // pred_check
        %p303 = pneg %p36
      $region54: #{wide_block_forward.1} parent=51 // pred_check_branch
        %305 = sbr.rel (%p303) target = $region56
      $region55: #{wide_block_forward.1} parent=51 // pred_region
        %p306 = scmp.lt.s32.totalorder %s16, 1
        %s307 = scalar_select %p306, %s16, 1
        %s308 = smul.addr %s307, 2
        %s309 = smul.addr %s308, 8
        %s310 = scalar_lea.vmem %s0, %s309
      $region56: #{wide_block_forward.1} parent=51 // pred_fallthru
        _
    $region52: #{wide_block_forward.1} parent=5 // pred_fallthru
      _
    %p311 = scmp.le.s32.totalorder 1, %s16
    %p312 = scmp.lt.s32.totalorder %s16, 3
    %p313 = pnand %p311, %p312
    %p314 = pneg %p313
    // Predicated region
    $region57: #{wide_block_forward.1} parent=5 // pred_check
      _
    $region58: #{wide_block_forward.1} parent=5 // pred_check_branch
      %316 = sbr.rel (%p313) target = $region60
    $region59: #{wide_block_forward.1} parent=5 // pred_region
      %s317 = ssub.s32 %s16, 1
      %p318 = scmp.lt.s32.totalorder %s21, 1
      %s319 = scalar_select %p318, %s21, 1
      %s320 = smul.addr %s319, 2
      %s321 = smul.addr %s320, 8
      %s322 = scalar_lea.vmem %s0, %s321
      %p323 = pneg %p42
      %p324 = pneg %p39
      %p325 = pneg %p63
      %p326 = pneg %p60
      %p327 = pneg %p84
      %p328 = pneg %p81
      %p329 = pneg %p105
      %p330 = pneg %p102
      %p331 = pneg %p126
      %p332 = pneg %p123
      %p333 = pneg %p147
      %p334 = pneg %p144
      %p335 = pneg %p168
      %p336 = pneg %p165
      %p337 = pneg %p189
      %p338 = pneg %p186
      %p339 = pneg %p210
      %p340 = pneg %p207
      %p341 = pneg %p231
      %p342 = pneg %p228
      %p343 = pneg %p257
      %p344 = pneg %p254
      %p345 = scmp.lt.s32.totalorder %s21, 1
      %s346 = scalar_select %p345, %s21, 1
      %s347 = smul.addr %s346, 2
      %s348 = smul.addr %s347, 8
      %s349 = scalar_lea.vmem %s10, %s348
      %p350 = scmp.lt.s32.totalorder %s21, 1
      %s351 = scalar_select %p350, %s21, 1
      %s352 = smul.addr %s351, 2
      %s353 = smul.addr %s352, 8
      %s354 = scalar_lea.vmem %s0, %s353
      %p355 = scmp.lt.s32.totalorder %s21, 1
      %s356 = scalar_select %p355, %s21, 1
      %s357 = smul.addr %s356, 2
      %s358 = smul.addr %s357, 8
      %s359 = scalar_lea.vmem %s10, %s358
      %v360 = vld [vmem:[%s354] sm:$0xff]
      %v361 = vld [vmem:[%s354 + $0x8] sm:$0xff]
      %v362 = vld [vmem:[%s1] sm:$0xff]
      %v363 = vld [vmem:[%s1 + $0x8] sm:$0xff]
      %v364 = vld [vmem:[%s1 + $0x10] sm:$0xff]
      %v365 = vld [vmem:[%s1 + $0x18] sm:$0xff]
      %v366 = vld [vmem:[%s2] sm:$0x1]
      %v368 = vlaneseq
      %v369 = vshrl.u32 %v368, 7
      %v370 = vsub.s32 0, %v369
      %v371 = vrot.slane %v366, %v370
      %v373 = vmul.f32 %v360, %v371
      %v374 = vmul.f32 %v361, %v371
      %v375 = vld [vmem:[%s3] sm:$0x1]
      %v377 = vlaneseq
      %v378 = vshrl.u32 %v377, 7
      %v379 = vsub.s32 0, %v378
      %v380 = vrot.slane %v375, %v379
      %v382 = vadd.f32 %v373, %v380
      %v383 = vadd.f32 %v374, %v380
      %v384 = vmax.f32 %v382, 0.0
      %v385 = vmax.f32 %v383, 0.0
      %vm386 = vcmask 130048
      %v388 = vsel %vm386, %v362, 0
      %v391 = vsel %vm386, %v363, 0
      %v394 = vsel %vm386, %v364, 0
      %v397 = vsel %vm386, %v365, 0
      %399 = vmatprep.subr.mxu0 0.0
      %400 = vmatpush1.msra.mxu0 0.0
      %401 = vmatprep.subr.mxu0 0.0
      %402 = vmatpush1.msra.mxu0 0.0
      %403 = vmatprep.subr.mxu0 0.0
      %404 = vmatpush1.msra.mxu0 0.0
      %405 = vmatprep.subr.mxu0 0.0
      %406 = vmatpush1.msra.mxu0 0.0
      %407 = vmatprep.subr.mxu0 0.0
      %408 = vmatpush1.msra.mxu0 0.0
      %409 = vmatprep.subr.mxu0 0.0
      %410 = vmatpush1.msra.mxu0 0.0
      %411 = vmatprep.subr.mxu0 0.0
      %412 = vmatpush1.msra.mxu0 0.0
      %413 = vmatprep.subr.mxu0 0.0
      %414 = vmatpush1.msra.mxu0 0.0
      %415 = vmatprep.subr.mxu0 0.0
      %416 = vmatpush1.msra.mxu0 0.0
      %417 = vmatprep.subr.mxu0 0.0
      %418 = vmatpush1.msra.mxu0 0.0
      %419 = vmatprep.subr.mxu0 0.0
      %420 = vmatpush1.msra.mxu0 0.0
      %421 = vmatprep.subr.mxu0 0.0
      %422 = vmatpush1.msra.mxu0 0.0
      %423 = vmatprep.subr.mxu0 0.0
      %424 = vmatpush1.msra.mxu0 0.0
      %425 = vmatprep.subr.mxu0 0.0
      %426 = vmatpush1.msra.mxu0 0.0
      %427 = vmatprep.subr.mxu0 0.0
      %428 = vmatpush1.msra.mxu0 %v385
      %429 = vmatprep.subr.mxu0 0.0
      %430 = vmatpush1.msra.mxu0 %v384
      %431 = vmatprep.subr.mxu0 0.0
      %432 = vmatpush2.msra.mxu0 0.0
      %433 = vmatprep.subr.mxu0 0.0
      %434 = vmatpush2.msra.mxu0 0.0
      %435 = vmatprep.subr.mxu0 0.0
      %436 = vmatpush2.msra.mxu0 0.0
      %437 = vmatprep.subr.mxu0 0.0
      %438 = vmatpush2.msra.mxu0 0.0
      %439 = vmatprep.subr.mxu0 0.0
      %440 = vmatpush2.msra.mxu0 0.0
      %441 = vmatprep.subr.mxu0 0.0
      %442 = vmatpush2.msra.mxu0 0.0
      %443 = vmatprep.subr.mxu0 0.0
      %444 = vmatpush2.msra.mxu0 0.0
      %445 = vmatprep.subr.mxu0 0.0
      %446 = vmatpush2.msra.mxu0 0.0
      %447 = vmatprep.subr.mxu0 0.0
      %448 = vmatpush2.msra.mxu0 0.0
      %449 = vmatprep.subr.mxu0 0.0
      %450 = vmatpush2.msra.mxu0 0.0
      %451 = vmatprep.subr.mxu0 0.0
      %452 = vmatpush2.msra.mxu0 0.0
      %453 = vmatprep.subr.mxu0 0.0
      %454 = vmatpush2.msra.mxu0 0.0
      %455 = vmatprep.subr.mxu0 0.0
      %456 = vmatpush2.msra.mxu0 0.0
      %457 = vmatprep.subr.mxu0 0.0
      %458 = vmatpush2.msra.mxu0 0.0
      %459 = vmatprep.subr.mxu0 0.0
      %460 = vmatpush2.msra.mxu0 0.0
      %461 = vmatprep.subr.mxu0 0.0
      %462 = vmatpush2.msra.mxu0 0.0
      %463 = vmatprep.mubr.f32.mxu0 0.0
      %464 = vmatmul.mubr.f32.gmra.mxu0 %v388
      %v465 = vpop.f32.mrf.mxu0
      %v466 = vadd.f32 0.0, %v465
      %v467 = vpop.f32.mrf.mxu0
      %468 = vmatprep.mubr.f32.mxu0 0.0
      %469 = vmatmul.mubr.f32.gmra.mxu0 %v391
      %v470 = vpop.f32.mrf.mxu0
      %v471 = vadd.f32 0.0, %v470
      %v472 = vpop.f32.mrf.mxu0
      %473 = vmatprep.mubr.f32.mxu0 0.0
      %474 = vmatmul.mubr.f32.gmra.mxu0 %v394
      %v475 = vpop.f32.mrf.mxu0
      %v476 = vadd.f32 0.0, %v475
      %v477 = vpop.f32.mrf.mxu0
      %478 = vmatprep.mubr.f32.mxu0 0.0
      %479 = vmatmul.mubr.f32.gmra.mxu0 %v397
      %v480 = vpop.f32.mrf.mxu0
      %v481 = vadd.f32 0.0, %v480
      %v482 = vpop.f32.mrf.mxu0
      %483 = vdwg.mxu0
      %v484 = vld [vmem:[%s4] sm:$0xff]
      %v485 = vld [vmem:[%s4 + $0x8] sm:$0xff]
      %v486 = vld [vmem:[%s4 + $0x10] sm:$0xff]
      %v487 = vld [vmem:[%s4 + $0x18] sm:$0xff]
      %v488 = vld [vmem:[%s4 + $0x20] sm:$0xff]
      %v489 = vld [vmem:[%s4 + $0x28] sm:$0xff]
      %v490 = vld [vmem:[%s4 + $0x30] sm:$0xff]
      %v491 = vld [vmem:[%s4 + $0x38] sm:$0xff]
      %s492 = scalar_lea.vmem %s4, 64
      %v493 = vld [vmem:[%s492] sm:$0xff]
      %v494 = vld [vmem:[%s492 + $0x8] sm:$0xff]
      %v495 = vld [vmem:[%s492 + $0x10] sm:$0xff]
      %v496 = vld [vmem:[%s492 + $0x18] sm:$0xff]
      %v497 = vld [vmem:[%s492 + $0x20] sm:$0xff]
      %v498 = vld [vmem:[%s492 + $0x28] sm:$0xff]
      %v499 = vld [vmem:[%s492 + $0x30] sm:$0xff]
      %v500 = vld [vmem:[%s492 + $0x38] sm:$0xff]
      %vm501 = vcmask 523264
      %v503 = vsel %vm501, %v384, 0
      %v506 = vsel %vm501, %v385, 0
      %508 = vmatprep.subr.mxu0 0.0
      %509 = vmatpush1.msra.mxu0 0.0
      %510 = vmatprep.subr.mxu0 0.0
      %511 = vmatpush1.msra.mxu0 0.0
      %512 = vmatprep.subr.mxu0 0.0
      %513 = vmatpush1.msra.mxu0 0.0
      %514 = vmatprep.subr.mxu0 0.0
      %515 = vmatpush1.msra.mxu0 0.0
      %516 = vmatprep.subr.mxu0 0.0
      %517 = vmatpush1.msra.mxu0 0.0
      %518 = vmatprep.subr.mxu0 0.0
      %519 = vmatpush1.msra.mxu0 0.0
      %520 = vmatprep.subr.mxu0 0.0
      %521 = vmatpush1.msra.mxu0 0.0
      %522 = vmatprep.subr.mxu0 0.0
      %523 = vmatpush1.msra.mxu0 0.0
      %524 = vmatprep.subr.mxu0 0.0
      %525 = vmatpush1.msra.mxu0 %v500
      %526 = vmatprep.subr.mxu0 0.0
      %527 = vmatpush1.msra.mxu0 %v499
      %528 = vmatprep.subr.mxu0 0.0
      %529 = vmatpush1.msra.mxu0 %v498
      %530 = vmatprep.subr.mxu0 0.0
      %531 = vmatpush1.msra.mxu0 %v497
      %532 = vmatprep.subr.mxu0 0.0
      %533 = vmatpush1.msra.mxu0 %v496
      %534 = vmatprep.subr.mxu0 0.0
      %535 = vmatpush1.msra.mxu0 %v495
      %536 = vmatprep.subr.mxu0 0.0
      %537 = vmatpush1.msra.mxu0 %v494
      %538 = vmatprep.subr.mxu0 0.0
      %539 = vmatpush1.msra.mxu0 %v493
      %540 = vmatprep.subr.mxu0 0.0
      %541 = vmatpush2.msra.mxu0 0.0
      %542 = vmatprep.subr.mxu0 0.0
      %543 = vmatpush2.msra.mxu0 0.0
      %544 = vmatprep.subr.mxu0 0.0
      %545 = vmatpush2.msra.mxu0 0.0
      %546 = vmatprep.subr.mxu0 0.0
      %547 = vmatpush2.msra.mxu0 0.0
      %548 = vmatprep.subr.mxu0 0.0
      %549 = vmatpush2.msra.mxu0 0.0
      %550 = vmatprep.subr.mxu0 0.0
      %551 = vmatpush2.msra.mxu0 0.0
      %552 = vmatprep.subr.mxu0 0.0
      %553 = vmatpush2.msra.mxu0 0.0
      %554 = vmatprep.subr.mxu0 0.0
      %555 = vmatpush2.msra.mxu0 0.0
      %556 = vmatprep.subr.mxu0 0.0
      %557 = vmatpush2.msra.mxu0 0.0
      %558 = vmatprep.subr.mxu0 0.0
      %559 = vmatpush2.msra.mxu0 0.0
      %560 = vmatprep.subr.mxu0 0.0
      %561 = vmatpush2.msra.mxu0 0.0
      %562 = vmatprep.subr.mxu0 0.0
      %563 = vmatpush2.msra.mxu0 0.0
      %564 = vmatprep.subr.mxu0 0.0
      %565 = vmatpush2.msra.mxu0 0.0
      %566 = vmatprep.subr.mxu0 0.0
      %567 = vmatpush2.msra.mxu0 0.0
      %568 = vmatprep.subr.mxu0 0.0
      %569 = vmatpush2.msra.mxu0 0.0
      %570 = vmatprep.subr.mxu0 0.0
      %571 = vmatpush2.msra.mxu0 0.0
      %572 = vmatprep.mubr.f32.mxu0 0.0
      %573 = vmatmul.mubr.f32.gmra.mxu0 %v503
      %v574 = vpop.f32.mrf.mxu0
      %v575 = vadd.f32 0.0, %v574
      %v576 = vpop.f32.mrf.mxu0
      %577 = vmatprep.mubr.f32.mxu0 0.0
      %578 = vmatmul.mubr.f32.gmra.mxu0 %v506
      %v579 = vpop.f32.mrf.mxu0
      %v580 = vadd.f32 0.0, %v579
      %v581 = vpop.f32.mrf.mxu0
      %582 = vdwg.mxu0
      %v584 = vsel %vm501, %v466, 0
      %v587 = vsel %vm501, %v471, 0
      %589 = vmatprep.subr.mxu0 0.0
      %590 = vmatpush1.msra.mxu0 0.0
      %591 = vmatprep.subr.mxu0 0.0
      %592 = vmatpush1.msra.mxu0 0.0
      %593 = vmatprep.subr.mxu0 0.0
      %594 = vmatpush1.msra.mxu0 0.0
      %595 = vmatprep.subr.mxu0 0.0
      %596 = vmatpush1.msra.mxu0 0.0
      %597 = vmatprep.subr.mxu0 0.0
      %598 = vmatpush1.msra.mxu0 0.0
      %599 = vmatprep.subr.mxu0 0.0
      %600 = vmatpush1.msra.mxu0 0.0
      %601 = vmatprep.subr.mxu0 0.0
      %602 = vmatpush1.msra.mxu0 0.0
      %603 = vmatprep.subr.mxu0 0.0
      %604 = vmatpush1.msra.mxu0 0.0
      %605 = vmatprep.subr.mxu0 0.0
      %606 = vmatpush1.msra.mxu0 %v491
      %607 = vmatprep.subr.mxu0 0.0
      %608 = vmatpush1.msra.mxu0 %v490
      %609 = vmatprep.subr.mxu0 0.0
      %610 = vmatpush1.msra.mxu0 %v489
      %611 = vmatprep.subr.mxu0 0.0
      %612 = vmatpush1.msra.mxu0 %v488
      %613 = vmatprep.subr.mxu0 0.0
      %614 = vmatpush1.msra.mxu0 %v487
      %615 = vmatprep.subr.mxu0 0.0
      %616 = vmatpush1.msra.mxu0 %v486
      %617 = vmatprep.subr.mxu0 0.0
      %618 = vmatpush1.msra.mxu0 %v485
      %619 = vmatprep.subr.mxu0 0.0
      %620 = vmatpush1.msra.mxu0 %v484
      %621 = vmatprep.subr.mxu0 0.0
      %622 = vmatpush2.msra.mxu0 0.0
      %623 = vmatprep.subr.mxu0 0.0
      %624 = vmatpush2.msra.mxu0 0.0
      %625 = vmatprep.subr.mxu0 0.0
      %626 = vmatpush2.msra.mxu0 0.0
      %627 = vmatprep.subr.mxu0 0.0
      %628 = vmatpush2.msra.mxu0 0.0
      %629 = vmatprep.subr.mxu0 0.0
      %630 = vmatpush2.msra.mxu0 0.0
      %631 = vmatprep.subr.mxu0 0.0
      %632 = vmatpush2.msra.mxu0 0.0
      %633 = vmatprep.subr.mxu0 0.0
      %634 = vmatpush2.msra.mxu0 0.0
      %635 = vmatprep.subr.mxu0 0.0
      %636 = vmatpush2.msra.mxu0 0.0
      %637 = vmatprep.subr.mxu0 0.0
      %638 = vmatpush2.msra.mxu0 0.0
      %639 = vmatprep.subr.mxu0 0.0
      %640 = vmatpush2.msra.mxu0 0.0
      %641 = vmatprep.subr.mxu0 0.0
      %642 = vmatpush2.msra.mxu0 0.0
      %643 = vmatprep.subr.mxu0 0.0
      %644 = vmatpush2.msra.mxu0 0.0
      %645 = vmatprep.subr.mxu0 0.0
      %646 = vmatpush2.msra.mxu0 0.0
      %647 = vmatprep.subr.mxu0 0.0
      %648 = vmatpush2.msra.mxu0 0.0
      %649 = vmatprep.subr.mxu0 0.0
      %650 = vmatpush2.msra.mxu0 0.0
      %651 = vmatprep.subr.mxu0 0.0
      %652 = vmatpush2.msra.mxu0 0.0
      %653 = vmatprep.mubr.f32.mxu0 0.0
      %654 = vmatmul.mubr.f32.gmra.mxu0 %v584
      %v655 = vpop.f32.mrf.mxu0
      %v656 = vadd.f32 %v575, %v655
      %v657 = vpop.f32.mrf.mxu0
      %658 = vmatprep.mubr.f32.mxu0 0.0
      %659 = vmatmul.mubr.f32.gmra.mxu0 %v587
      %v660 = vpop.f32.mrf.mxu0
      %v661 = vadd.f32 %v580, %v660
      %v662 = vpop.f32.mrf.mxu0
      %663 = vdwg.mxu0
      %s664 = scalar_lea.vmem %s4, 128
      %v665 = vld [vmem:[%s664] sm:$0xff]
      %v666 = vld [vmem:[%s664 + $0x8] sm:$0xff]
      %v667 = vld [vmem:[%s664 + $0x10] sm:$0xff]
      %v668 = vld [vmem:[%s664 + $0x18] sm:$0xff]
      %v669 = vld [vmem:[%s664 + $0x20] sm:$0xff]
      %v670 = vld [vmem:[%s664 + $0x28] sm:$0xff]
      %v671 = vld [vmem:[%s664 + $0x30] sm:$0xff]
      %v672 = vld [vmem:[%s664 + $0x38] sm:$0xff]
      %v674 = vsel %vm501, %v476, 0
      %v677 = vsel %vm501, %v481, 0
      %679 = vmatprep.subr.mxu0 0.0
      %680 = vmatpush1.msra.mxu0 0.0
      %681 = vmatprep.subr.mxu0 0.0
      %682 = vmatpush1.msra.mxu0 0.0
      %683 = vmatprep.subr.mxu0 0.0
      %684 = vmatpush1.msra.mxu0 0.0
      %685 = vmatprep.subr.mxu0 0.0
      %686 = vmatpush1.msra.mxu0 0.0
      %687 = vmatprep.subr.mxu0 0.0
      %688 = vmatpush1.msra.mxu0 0.0
      %689 = vmatprep.subr.mxu0 0.0
      %690 = vmatpush1.msra.mxu0 0.0
      %691 = vmatprep.subr.mxu0 0.0
      %692 = vmatpush1.msra.mxu0 0.0
      %693 = vmatprep.subr.mxu0 0.0
      %694 = vmatpush1.msra.mxu0 0.0
      %695 = vmatprep.subr.mxu0 0.0
      %696 = vmatpush1.msra.mxu0 %v672
      %697 = vmatprep.subr.mxu0 0.0
      %698 = vmatpush1.msra.mxu0 %v671
      %699 = vmatprep.subr.mxu0 0.0
      %700 = vmatpush1.msra.mxu0 %v670
      %701 = vmatprep.subr.mxu0 0.0
      %702 = vmatpush1.msra.mxu0 %v669
      %703 = vmatprep.subr.mxu0 0.0
      %704 = vmatpush1.msra.mxu0 %v668
      %705 = vmatprep.subr.mxu0 0.0
      %706 = vmatpush1.msra.mxu0 %v667
      %707 = vmatprep.subr.mxu0 0.0
      %708 = vmatpush1.msra.mxu0 %v666
      %709 = vmatprep.subr.mxu0 0.0
      %710 = vmatpush1.msra.mxu0 %v665
      %711 = vmatprep.subr.mxu0 0.0
      %712 = vmatpush2.msra.mxu0 0.0
      %713 = vmatprep.subr.mxu0 0.0
      %714 = vmatpush2.msra.mxu0 0.0
      %715 = vmatprep.subr.mxu0 0.0
      %716 = vmatpush2.msra.mxu0 0.0
      %717 = vmatprep.subr.mxu0 0.0
      %718 = vmatpush2.msra.mxu0 0.0
      %719 = vmatprep.subr.mxu0 0.0
      %720 = vmatpush2.msra.mxu0 0.0
      %721 = vmatprep.subr.mxu0 0.0
      %722 = vmatpush2.msra.mxu0 0.0
      %723 = vmatprep.subr.mxu0 0.0
      %724 = vmatpush2.msra.mxu0 0.0
      %725 = vmatprep.subr.mxu0 0.0
      %726 = vmatpush2.msra.mxu0 0.0
      %727 = vmatprep.subr.mxu0 0.0
      %728 = vmatpush2.msra.mxu0 0.0
      %729 = vmatprep.subr.mxu0 0.0
      %730 = vmatpush2.msra.mxu0 0.0
      %731 = vmatprep.subr.mxu0 0.0
      %732 = vmatpush2.msra.mxu0 0.0
      %733 = vmatprep.subr.mxu0 0.0
      %734 = vmatpush2.msra.mxu0 0.0
      %735 = vmatprep.subr.mxu0 0.0
      %736 = vmatpush2.msra.mxu0 0.0
      %737 = vmatprep.subr.mxu0 0.0
      %738 = vmatpush2.msra.mxu0 0.0
      %739 = vmatprep.subr.mxu0 0.0
      %740 = vmatpush2.msra.mxu0 0.0
      %741 = vmatprep.subr.mxu0 0.0
      %742 = vmatpush2.msra.mxu0 0.0
      %743 = vmatprep.mubr.f32.mxu0 0.0
      %744 = vmatmul.mubr.f32.gmra.mxu0 %v674
      %v745 = vpop.f32.mrf.mxu0
      %v746 = vadd.f32 0.0, %v745
      %v747 = vpop.f32.mrf.mxu0
      %748 = vmatprep.mubr.f32.mxu0 0.0
      %749 = vmatmul.mubr.f32.gmra.mxu0 %v677
      %v750 = vpop.f32.mrf.mxu0
      %v751 = vadd.f32 0.0, %v750
      %v752 = vpop.f32.mrf.mxu0
      %753 = vdwg.mxu0
      %v754 = vadd.f32 %v656, %v746
      %v755 = vadd.f32 %v661, %v751
      %v756 = vld [vmem:[%s5] sm:$0x1]
      %v758 = vlaneseq
      %v759 = vshrl.u32 %v758, 7
      %v760 = vsub.s32 0, %v759
      %v761 = vrot.slane %v756, %v760
      %v763 = vmul.f32 %v754, %v761
      %v764 = vmul.f32 %v755, %v761
      %v765 = vld [vmem:[%s6] sm:$0x1]
      %v767 = vlaneseq
      %v768 = vshrl.u32 %v767, 7
      %v769 = vsub.s32 0, %v768
      %v770 = vrot.slane %v765, %v769
      %v772 = vadd.f32 %v763, %v770
      %v773 = vadd.f32 %v764, %v770
      %v774 = vmax.f32 %v772, 0.0
      %v775 = vmax.f32 %v773, 0.0
      %776 = vmatprep.subr.mxu0 0.0
      %777 = vmatpush1.msra.mxu0 0.0
      %778 = vmatprep.subr.mxu0 0.0
      %779 = vmatpush1.msra.mxu0 0.0
      %780 = vmatprep.subr.mxu0 0.0
      %781 = vmatpush1.msra.mxu0 0.0
      %782 = vmatprep.subr.mxu0 0.0
      %783 = vmatpush1.msra.mxu0 0.0
      %784 = vmatprep.subr.mxu0 0.0
      %785 = vmatpush1.msra.mxu0 0.0
      %786 = vmatprep.subr.mxu0 0.0
      %787 = vmatpush1.msra.mxu0 0.0
      %788 = vmatprep.subr.mxu0 0.0
      %789 = vmatpush1.msra.mxu0 0.0
      %790 = vmatprep.subr.mxu0 0.0
      %791 = vmatpush1.msra.mxu0 0.0
      %792 = vmatprep.subr.mxu0 0.0
      %793 = vmatpush1.msra.mxu0 0.0
      %794 = vmatprep.subr.mxu0 0.0
      %795 = vmatpush1.msra.mxu0 0.0
      %796 = vmatprep.subr.mxu0 0.0
      %797 = vmatpush1.msra.mxu0 0.0
      %798 = vmatprep.subr.mxu0 0.0
      %799 = vmatpush1.msra.mxu0 0.0
      %800 = vmatprep.subr.mxu0 0.0
      %801 = vmatpush1.msra.mxu0 0.0
      %802 = vmatprep.subr.mxu0 0.0
      %803 = vmatpush1.msra.mxu0 0.0
      %804 = vmatprep.subr.mxu0 0.0
      %805 = vmatpush1.msra.mxu0 %v775
      %806 = vmatprep.subr.mxu0 0.0
      %807 = vmatpush1.msra.mxu0 %v774
      %808 = vmatprep.subr.mxu0 0.0
      %809 = vmatpush2.msra.mxu0 0.0
      %810 = vmatprep.subr.mxu0 0.0
      %811 = vmatpush2.msra.mxu0 0.0
      %812 = vmatprep.subr.mxu0 0.0
      %813 = vmatpush2.msra.mxu0 0.0
      %814 = vmatprep.subr.mxu0 0.0
      %815 = vmatpush2.msra.mxu0 0.0
      %816 = vmatprep.subr.mxu0 0.0
      %817 = vmatpush2.msra.mxu0 0.0
      %818 = vmatprep.subr.mxu0 0.0
      %819 = vmatpush2.msra.mxu0 0.0
      %820 = vmatprep.subr.mxu0 0.0
      %821 = vmatpush2.msra.mxu0 0.0
      %822 = vmatprep.subr.mxu0 0.0
      %823 = vmatpush2.msra.mxu0 0.0
      %824 = vmatprep.subr.mxu0 0.0
      %825 = vmatpush2.msra.mxu0 0.0
      %826 = vmatprep.subr.mxu0 0.0
      %827 = vmatpush2.msra.mxu0 0.0
      %828 = vmatprep.subr.mxu0 0.0
      %829 = vmatpush2.msra.mxu0 0.0
      %830 = vmatprep.subr.mxu0 0.0
      %831 = vmatpush2.msra.mxu0 0.0
      %832 = vmatprep.subr.mxu0 0.0
      %833 = vmatpush2.msra.mxu0 0.0
      %834 = vmatprep.subr.mxu0 0.0
      %835 = vmatpush2.msra.mxu0 0.0
      %836 = vmatprep.subr.mxu0 0.0
      %837 = vmatpush2.msra.mxu0 0.0
      %838 = vmatprep.subr.mxu0 0.0
      %839 = vmatpush2.msra.mxu0 0.0
      %840 = vmatprep.mubr.f32.mxu0 0.0
      %841 = vmatmul.mubr.f32.gmra.mxu0 %v388
      %v842 = vpop.f32.mrf.mxu0
      %v843 = vadd.f32 0.0, %v842
      %v844 = vpop.f32.mrf.mxu0
      %845 = vmatprep.mubr.f32.mxu0 0.0
      %846 = vmatmul.mubr.f32.gmra.mxu0 %v391
      %v847 = vpop.f32.mrf.mxu0
      %v848 = vadd.f32 0.0, %v847
      %v849 = vpop.f32.mrf.mxu0
      %850 = vmatprep.mubr.f32.mxu0 0.0
      %851 = vmatmul.mubr.f32.gmra.mxu0 %v394
      %v852 = vpop.f32.mrf.mxu0
      %v853 = vadd.f32 0.0, %v852
      %v854 = vpop.f32.mrf.mxu0
      %855 = vmatprep.mubr.f32.mxu0 0.0
      %856 = vmatmul.mubr.f32.gmra.mxu0 %v397
      %v857 = vpop.f32.mrf.mxu0
      %v858 = vadd.f32 0.0, %v857
      %v859 = vpop.f32.mrf.mxu0
      %860 = vdwg.mxu0
      %v861 = vld [vmem:[%s7] sm:$0xff]
      %v862 = vld [vmem:[%s7 + $0x8] sm:$0xff]
      %v863 = vld [vmem:[%s7 + $0x10] sm:$0xff]
      %v864 = vld [vmem:[%s7 + $0x18] sm:$0xff]
      %v865 = vld [vmem:[%s7 + $0x20] sm:$0xff]
      %v866 = vld [vmem:[%s7 + $0x28] sm:$0xff]
      %v867 = vld [vmem:[%s7 + $0x30] sm:$0xff]
      %v868 = vld [vmem:[%s7 + $0x38] sm:$0xff]
      %v869 = vld [vmem:[%s7 + $0x40] sm:$0xff]
      %v870 = vld [vmem:[%s7 + $0x48] sm:$0xff]
      %v871 = vld [vmem:[%s7 + $0x50] sm:$0xff]
      %v872 = vld [vmem:[%s7 + $0x58] sm:$0xff]
      %v873 = vld [vmem:[%s7 + $0x60] sm:$0xff]
      %v874 = vld [vmem:[%s7 + $0x68] sm:$0xff]
      %v875 = vld [vmem:[%s7 + $0x70] sm:$0xff]
      %v876 = vld [vmem:[%s7 + $0x78] sm:$0xff]
      %s877 = scalar_lea.vmem %s7, 128
      %v878 = vld [vmem:[%s877] sm:$0xff]
      %v879 = vld [vmem:[%s877 + $0x8] sm:$0xff]
      %v880 = vld [vmem:[%s877 + $0x10] sm:$0xff]
      %v881 = vld [vmem:[%s877 + $0x18] sm:$0xff]
      %v882 = vld [vmem:[%s877 + $0x20] sm:$0xff]
      %v883 = vld [vmem:[%s877 + $0x28] sm:$0xff]
      %v884 = vld [vmem:[%s877 + $0x30] sm:$0xff]
      %v885 = vld [vmem:[%s877 + $0x38] sm:$0xff]
      %v886 = vld [vmem:[%s877 + $0x40] sm:$0xff]
      %v887 = vld [vmem:[%s877 + $0x48] sm:$0xff]
      %v888 = vld [vmem:[%s877 + $0x50] sm:$0xff]
      %v889 = vld [vmem:[%s877 + $0x58] sm:$0xff]
      %v890 = vld [vmem:[%s877 + $0x60] sm:$0xff]
      %v891 = vld [vmem:[%s877 + $0x68] sm:$0xff]
      %v892 = vld [vmem:[%s877 + $0x70] sm:$0xff]
      %v893 = vld [vmem:[%s877 + $0x78] sm:$0xff]
      %894 = vmatprep.subr.mxu0 0.0
      %895 = vmatpush1.msra.mxu0 %v893
      %896 = vmatprep.subr.mxu0 0.0
      %897 = vmatpush1.msra.mxu0 %v892
      %898 = vmatprep.subr.mxu0 0.0
      %899 = vmatpush1.msra.mxu0 %v891
      %900 = vmatprep.subr.mxu0 0.0
      %901 = vmatpush1.msra.mxu0 %v890
      %902 = vmatprep.subr.mxu0 0.0
      %903 = vmatpush1.msra.mxu0 %v889
      %904 = vmatprep.subr.mxu0 0.0
      %905 = vmatpush1.msra.mxu0 %v888
      %906 = vmatprep.subr.mxu0 0.0
      %907 = vmatpush1.msra.mxu0 %v887
      %908 = vmatprep.subr.mxu0 0.0
      %909 = vmatpush1.msra.mxu0 %v886
      %910 = vmatprep.subr.mxu0 0.0
      %911 = vmatpush1.msra.mxu0 %v885
      %912 = vmatprep.subr.mxu0 0.0
      %913 = vmatpush1.msra.mxu0 %v884
      %914 = vmatprep.subr.mxu0 0.0
      %915 = vmatpush1.msra.mxu0 %v883
      %916 = vmatprep.subr.mxu0 0.0
      %917 = vmatpush1.msra.mxu0 %v882
      %918 = vmatprep.subr.mxu0 0.0
      %919 = vmatpush1.msra.mxu0 %v881
      %920 = vmatprep.subr.mxu0 0.0
      %921 = vmatpush1.msra.mxu0 %v880
      %922 = vmatprep.subr.mxu0 0.0
      %923 = vmatpush1.msra.mxu0 %v879
      %924 = vmatprep.subr.mxu0 0.0
      %925 = vmatpush1.msra.mxu0 %v878
      %926 = vmatprep.subr.mxu0 0.0
      %927 = vmatpush2.msra.mxu0 0.0
      %928 = vmatprep.subr.mxu0 0.0
      %929 = vmatpush2.msra.mxu0 0.0
      %930 = vmatprep.subr.mxu0 0.0
      %931 = vmatpush2.msra.mxu0 0.0
      %932 = vmatprep.subr.mxu0 0.0
      %933 = vmatpush2.msra.mxu0 0.0
      %934 = vmatprep.subr.mxu0 0.0
      %935 = vmatpush2.msra.mxu0 0.0
      %936 = vmatprep.subr.mxu0 0.0
      %937 = vmatpush2.msra.mxu0 0.0
      %938 = vmatprep.subr.mxu0 0.0
      %939 = vmatpush2.msra.mxu0 0.0
      %940 = vmatprep.subr.mxu0 0.0
      %941 = vmatpush2.msra.mxu0 0.0
      %942 = vmatprep.subr.mxu0 0.0
      %943 = vmatpush2.msra.mxu0 0.0
      %944 = vmatprep.subr.mxu0 0.0
      %945 = vmatpush2.msra.mxu0 0.0
      %946 = vmatprep.subr.mxu0 0.0
      %947 = vmatpush2.msra.mxu0 0.0
      %948 = vmatprep.subr.mxu0 0.0
      %949 = vmatpush2.msra.mxu0 0.0
      %950 = vmatprep.subr.mxu0 0.0
      %951 = vmatpush2.msra.mxu0 0.0
      %952 = vmatprep.subr.mxu0 0.0
      %953 = vmatpush2.msra.mxu0 0.0
      %954 = vmatprep.subr.mxu0 0.0
      %955 = vmatpush2.msra.mxu0 0.0
      %956 = vmatprep.subr.mxu0 0.0
      %957 = vmatpush2.msra.mxu0 0.0
      %958 = vmatprep.mubr.f32.mxu0 0.0
      %959 = vmatmul.mubr.f32.gmra.mxu0 %v774
      %v960 = vpop.f32.mrf.mxu0
      %v961 = vadd.f32 0.0, %v960
      %v962 = vpop.f32.mrf.mxu0
      %963 = vmatprep.mubr.f32.mxu0 0.0
      %964 = vmatmul.mubr.f32.gmra.mxu0 %v775
      %v965 = vpop.f32.mrf.mxu0
      %v966 = vadd.f32 0.0, %v965
      %v967 = vpop.f32.mrf.mxu0
      %968 = vdwg.mxu0
      %969 = vmatprep.subr.mxu0 0.0
      %970 = vmatpush1.msra.mxu0 %v876
      %971 = vmatprep.subr.mxu0 0.0
      %972 = vmatpush1.msra.mxu0 %v875
      %973 = vmatprep.subr.mxu0 0.0
      %974 = vmatpush1.msra.mxu0 %v874
      %975 = vmatprep.subr.mxu0 0.0
      %976 = vmatpush1.msra.mxu0 %v873
      %977 = vmatprep.subr.mxu0 0.0
      %978 = vmatpush1.msra.mxu0 %v872
      %979 = vmatprep.subr.mxu0 0.0
      %980 = vmatpush1.msra.mxu0 %v871
      %981 = vmatprep.subr.mxu0 0.0
      %982 = vmatpush1.msra.mxu0 %v870
      %983 = vmatprep.subr.mxu0 0.0
      %984 = vmatpush1.msra.mxu0 %v869
      %985 = vmatprep.subr.mxu0 0.0
      %986 = vmatpush1.msra.mxu0 %v868
      %987 = vmatprep.subr.mxu0 0.0
      %988 = vmatpush1.msra.mxu0 %v867
      %989 = vmatprep.subr.mxu0 0.0
      %990 = vmatpush1.msra.mxu0 %v866
      %991 = vmatprep.subr.mxu0 0.0
      %992 = vmatpush1.msra.mxu0 %v865
      %993 = vmatprep.subr.mxu0 0.0
      %994 = vmatpush1.msra.mxu0 %v864
      %995 = vmatprep.subr.mxu0 0.0
      %996 = vmatpush1.msra.mxu0 %v863
      %997 = vmatprep.subr.mxu0 0.0
      %998 = vmatpush1.msra.mxu0 %v862
      %999 = vmatprep.subr.mxu0 0.0
      %1000 = vmatpush1.msra.mxu0 %v861
      %1001 = vmatprep.subr.mxu0 0.0
      %1002 = vmatpush2.msra.mxu0 0.0
      %1003 = vmatprep.subr.mxu0 0.0
      %1004 = vmatpush2.msra.mxu0 0.0
      %1005 = vmatprep.subr.mxu0 0.0
      %1006 = vmatpush2.msra.mxu0 0.0
      %1007 = vmatprep.subr.mxu0 0.0
      %1008 = vmatpush2.msra.mxu0 0.0
      %1009 = vmatprep.subr.mxu0 0.0
      %1010 = vmatpush2.msra.mxu0 0.0
      %1011 = vmatprep.subr.mxu0 0.0
      %1012 = vmatpush2.msra.mxu0 0.0
      %1013 = vmatprep.subr.mxu0 0.0
      %1014 = vmatpush2.msra.mxu0 0.0
      %1015 = vmatprep.subr.mxu0 0.0
      %1016 = vmatpush2.msra.mxu0 0.0
      %1017 = vmatprep.subr.mxu0 0.0
      %1018 = vmatpush2.msra.mxu0 0.0
      %1019 = vmatprep.subr.mxu0 0.0
      %1020 = vmatpush2.msra.mxu0 0.0
      %1021 = vmatprep.subr.mxu0 0.0
      %1022 = vmatpush2.msra.mxu0 0.0
      %1023 = vmatprep.subr.mxu0 0.0
      %1024 = vmatpush2.msra.mxu0 0.0
      %1025 = vmatprep.subr.mxu0 0.0
      %1026 = vmatpush2.msra.mxu0 0.0
      %1027 = vmatprep.subr.mxu0 0.0
      %1028 = vmatpush2.msra.mxu0 0.0
      %1029 = vmatprep.subr.mxu0 0.0
      %1030 = vmatpush2.msra.mxu0 0.0
      %1031 = vmatprep.subr.mxu0 0.0
      %1032 = vmatpush2.msra.mxu0 0.0
      %1033 = vmatprep.mubr.f32.mxu0 0.0
      %1034 = vmatmul.mubr.f32.gmra.mxu0 %v843
      %v1035 = vpop.f32.mrf.mxu0
      %v1036 = vadd.f32 %v961, %v1035
      %v1037 = vpop.f32.mrf.mxu0
      %1038 = vmatprep.mubr.f32.mxu0 0.0
      %1039 = vmatmul.mubr.f32.gmra.mxu0 %v848
      %v1040 = vpop.f32.mrf.mxu0
      %v1041 = vadd.f32 %v966, %v1040
      %v1042 = vpop.f32.mrf.mxu0
      %1043 = vdwg.mxu0
      %s1044 = scalar_lea.vmem %s7, 256
      %v1045 = vld [vmem:[%s1044] sm:$0xff]
      %v1046 = vld [vmem:[%s1044 + $0x8] sm:$0xff]
      %v1047 = vld [vmem:[%s1044 + $0x10] sm:$0xff]
      %v1048 = vld [vmem:[%s1044 + $0x18] sm:$0xff]
      %v1049 = vld [vmem:[%s1044 + $0x20] sm:$0xff]
      %v1050 = vld [vmem:[%s1044 + $0x28] sm:$0xff]
      %v1051 = vld [vmem:[%s1044 + $0x30] sm:$0xff]
      %v1052 = vld [vmem:[%s1044 + $0x38] sm:$0xff]
      %v1053 = vld [vmem:[%s1044 + $0x40] sm:$0xff]
      %v1054 = vld [vmem:[%s1044 + $0x48] sm:$0xff]
      %v1055 = vld [vmem:[%s1044 + $0x50] sm:$0xff]
      %v1056 = vld [vmem:[%s1044 + $0x58] sm:$0xff]
      %v1057 = vld [vmem:[%s1044 + $0x60] sm:$0xff]
      %v1058 = vld [vmem:[%s1044 + $0x68] sm:$0xff]
      %v1059 = vld [vmem:[%s1044 + $0x70] sm:$0xff]
      %v1060 = vld [vmem:[%s1044 + $0x78] sm:$0xff]
      %1061 = vmatprep.subr.mxu0 0.0
      %1062 = vmatpush1.msra.mxu0 %v1060
      %1063 = vmatprep.subr.mxu0 0.0
      %1064 = vmatpush1.msra.mxu0 %v1059
      %1065 = vmatprep.subr.mxu0 0.0
      %1066 = vmatpush1.msra.mxu0 %v1058
      %1067 = vmatprep.subr.mxu0 0.0
      %1068 = vmatpush1.msra.mxu0 %v1057
      %1069 = vmatprep.subr.mxu0 0.0
      %1070 = vmatpush1.msra.mxu0 %v1056
      %1071 = vmatprep.subr.mxu0 0.0
      %1072 = vmatpush1.msra.mxu0 %v1055
      %1073 = vmatprep.subr.mxu0 0.0
      %1074 = vmatpush1.msra.mxu0 %v1054
      %1075 = vmatprep.subr.mxu0 0.0
      %1076 = vmatpush1.msra.mxu0 %v1053
      %1077 = vmatprep.subr.mxu0 0.0
      %1078 = vmatpush1.msra.mxu0 %v1052
      %1079 = vmatprep.subr.mxu0 0.0
      %1080 = vmatpush1.msra.mxu0 %v1051
      %1081 = vmatprep.subr.mxu0 0.0
      %1082 = vmatpush1.msra.mxu0 %v1050
      %1083 = vmatprep.subr.mxu0 0.0
      %1084 = vmatpush1.msra.mxu0 %v1049
      %1085 = vmatprep.subr.mxu0 0.0
      %1086 = vmatpush1.msra.mxu0 %v1048
      %1087 = vmatprep.subr.mxu0 0.0
      %1088 = vmatpush1.msra.mxu0 %v1047
      %1089 = vmatprep.subr.mxu0 0.0
      %1090 = vmatpush1.msra.mxu0 %v1046
      %1091 = vmatprep.subr.mxu0 0.0
      %1092 = vmatpush1.msra.mxu0 %v1045
      %1093 = vmatprep.subr.mxu0 0.0
      %1094 = vmatpush2.msra.mxu0 0.0
      %1095 = vmatprep.subr.mxu0 0.0
      %1096 = vmatpush2.msra.mxu0 0.0
      %1097 = vmatprep.subr.mxu0 0.0
      %1098 = vmatpush2.msra.mxu0 0.0
      %1099 = vmatprep.subr.mxu0 0.0
      %1100 = vmatpush2.msra.mxu0 0.0
      %1101 = vmatprep.subr.mxu0 0.0
      %1102 = vmatpush2.msra.mxu0 0.0
      %1103 = vmatprep.subr.mxu0 0.0
      %1104 = vmatpush2.msra.mxu0 0.0
      %1105 = vmatprep.subr.mxu0 0.0
      %1106 = vmatpush2.msra.mxu0 0.0
      %1107 = vmatprep.subr.mxu0 0.0
      %1108 = vmatpush2.msra.mxu0 0.0
      %1109 = vmatprep.subr.mxu0 0.0
      %1110 = vmatpush2.msra.mxu0 0.0
      %1111 = vmatprep.subr.mxu0 0.0
      %1112 = vmatpush2.msra.mxu0 0.0
      %1113 = vmatprep.subr.mxu0 0.0
      %1114 = vmatpush2.msra.mxu0 0.0
      %1115 = vmatprep.subr.mxu0 0.0
      %1116 = vmatpush2.msra.mxu0 0.0
      %1117 = vmatprep.subr.mxu0 0.0
      %1118 = vmatpush2.msra.mxu0 0.0
      %1119 = vmatprep.subr.mxu0 0.0
      %1120 = vmatpush2.msra.mxu0 0.0
      %1121 = vmatprep.subr.mxu0 0.0
      %1122 = vmatpush2.msra.mxu0 0.0
      %1123 = vmatprep.subr.mxu0 0.0
      %1124 = vmatpush2.msra.mxu0 0.0
      %1125 = vmatprep.mubr.f32.mxu0 0.0
      %1126 = vmatmul.mubr.f32.gmra.mxu0 %v853
      %v1127 = vpop.f32.mrf.mxu0
      %v1128 = vadd.f32 0.0, %v1127
      %v1129 = vpop.f32.mrf.mxu0
      %1130 = vmatprep.mubr.f32.mxu0 0.0
      %1131 = vmatmul.mubr.f32.gmra.mxu0 %v858
      %v1132 = vpop.f32.mrf.mxu0
      %v1133 = vadd.f32 0.0, %v1132
      %v1134 = vpop.f32.mrf.mxu0
      %1135 = vdwg.mxu0
      %v1136 = vadd.f32 %v1036, %v1128
      %v1137 = vadd.f32 %v1041, %v1133
      %v1138 = vld [vmem:[%s9] sm:$0xff]
      %v1139 = vld [vmem:[%s9 + $0x8] sm:$0xff]
      %v1140 = vld [vmem:[%s9 + $0x10] sm:$0xff]
      %v1141 = vld [vmem:[%s9 + $0x18] sm:$0xff]
      %v1142 = vld [vmem:[%s9 + $0x20] sm:$0xff]
      %v1143 = vld [vmem:[%s9 + $0x28] sm:$0xff]
      %v1144 = vld [vmem:[%s9 + $0x30] sm:$0xff]
      %v1145 = vld [vmem:[%s9 + $0x38] sm:$0xff]
      %v1147 = vsel %vm501, %v360, 0
      %v1150 = vsel %vm501, %v361, 0
      %1152 = vmatprep.subr.mxu0 0.0
      %1153 = vmatpush1.msra.mxu0 0.0
      %1154 = vmatprep.subr.mxu0 0.0
      %1155 = vmatpush1.msra.mxu0 0.0
      %1156 = vmatprep.subr.mxu0 0.0
      %1157 = vmatpush1.msra.mxu0 0.0
      %1158 = vmatprep.subr.mxu0 0.0
      %1159 = vmatpush1.msra.mxu0 0.0
      %1160 = vmatprep.subr.mxu0 0.0
      %1161 = vmatpush1.msra.mxu0 0.0
      %1162 = vmatprep.subr.mxu0 0.0
      %1163 = vmatpush1.msra.mxu0 0.0
      %1164 = vmatprep.subr.mxu0 0.0
      %1165 = vmatpush1.msra.mxu0 0.0
      %1166 = vmatprep.subr.mxu0 0.0
      %1167 = vmatpush1.msra.mxu0 0.0
      %1168 = vmatprep.subr.mxu0 0.0
      %1169 = vmatpush1.msra.mxu0 %v1145
      %1170 = vmatprep.subr.mxu0 0.0
      %1171 = vmatpush1.msra.mxu0 %v1144
      %1172 = vmatprep.subr.mxu0 0.0
      %1173 = vmatpush1.msra.mxu0 %v1143
      %1174 = vmatprep.subr.mxu0 0.0
      %1175 = vmatpush1.msra.mxu0 %v1142
      %1176 = vmatprep.subr.mxu0 0.0
      %1177 = vmatpush1.msra.mxu0 %v1141
      %1178 = vmatprep.subr.mxu0 0.0
      %1179 = vmatpush1.msra.mxu0 %v1140
      %1180 = vmatprep.subr.mxu0 0.0
      %1181 = vmatpush1.msra.mxu0 %v1139
      %1182 = vmatprep.subr.mxu0 0.0
      %1183 = vmatpush1.msra.mxu0 %v1138
      %1184 = vmatprep.subr.mxu0 0.0
      %1185 = vmatpush2.msra.mxu0 0.0
      %1186 = vmatprep.subr.mxu0 0.0
      %1187 = vmatpush2.msra.mxu0 0.0
      %1188 = vmatprep.subr.mxu0 0.0
      %1189 = vmatpush2.msra.mxu0 0.0
      %1190 = vmatprep.subr.mxu0 0.0
      %1191 = vmatpush2.msra.mxu0 0.0
      %1192 = vmatprep.subr.mxu0 0.0
      %1193 = vmatpush2.msra.mxu0 0.0
      %1194 = vmatprep.subr.mxu0 0.0
      %1195 = vmatpush2.msra.mxu0 0.0
      %1196 = vmatprep.subr.mxu0 0.0
      %1197 = vmatpush2.msra.mxu0 0.0
      %1198 = vmatprep.subr.mxu0 0.0
      %1199 = vmatpush2.msra.mxu0 0.0
      %1200 = vmatprep.subr.mxu0 0.0
      %1201 = vmatpush2.msra.mxu0 0.0
      %1202 = vmatprep.subr.mxu0 0.0
      %1203 = vmatpush2.msra.mxu0 0.0
      %1204 = vmatprep.subr.mxu0 0.0
      %1205 = vmatpush2.msra.mxu0 0.0
      %1206 = vmatprep.subr.mxu0 0.0
      %1207 = vmatpush2.msra.mxu0 0.0
      %1208 = vmatprep.subr.mxu0 0.0
      %1209 = vmatpush2.msra.mxu0 0.0
      %1210 = vmatprep.subr.mxu0 0.0
      %1211 = vmatpush2.msra.mxu0 0.0
      %1212 = vmatprep.subr.mxu0 0.0
      %1213 = vmatpush2.msra.mxu0 0.0
      %1214 = vmatprep.subr.mxu0 0.0
      %1215 = vmatpush2.msra.mxu0 0.0
      %1216 = vmatprep.mubr.f32.mxu0 0.0
      %1217 = vmatmul.mubr.f32.gmra.mxu0 %v1147
      %v1218 = vpop.f32.mrf.mxu0
      %v1219 = vadd.f32 0.0, %v1218
      %v1220 = vpop.f32.mrf.mxu0
      %1221 = vmatprep.mubr.f32.mxu0 0.0
      %1222 = vmatmul.mubr.f32.gmra.mxu0 %v1150
      %v1223 = vpop.f32.mrf.mxu0
      %v1224 = vadd.f32 0.0, %v1223
      %v1225 = vpop.f32.mrf.mxu0
      %1226 = vdwg.mxu0
      %v1227 = vadd.f32 %v1136, %v1219
      %v1228 = vadd.f32 %v1137, %v1224
      %v1229 = vld [vmem:[%s8] sm:$0x1]
      %v1231 = vlaneseq
      %v1232 = vshrl.u32 %v1231, 7
      %v1233 = vsub.s32 0, %v1232
      %v1234 = vrot.slane %v1229, %v1233
      %v1236 = vadd.f32 %v1227, %v1234
      %v1237 = vadd.f32 %v1228, %v1234
      %1238 = vst [vmem:[%s359] sm:$0xff] %v1236
      %1239 = vst [vmem:[%s359 + $0x8] sm:$0xff] %v1237
      %p1240 = scmp.lt.s32.totalorder %s21, 1
      %s1241 = scalar_select %p1240, %s21, 1
      %s1242 = smul.addr %s1241, 2
      %s1243 = smul.addr %s1242, 8
      %s1244 = scalar_lea.vmem %s10, %s1243
      // Predicated region
      $region61: #{wide_block_forward.1} parent=59 // pred_check
        %p1245 = pneg %p254
      $region62: #{wide_block_forward.1} parent=59 // pred_check_branch
        %1247 = sbr.rel (%p1245) target = $region64
      $region63: #{wide_block_forward.1} parent=59 // pred_region
        _
      $region64: #{wide_block_forward.1} parent=59 // pred_fallthru
        _
    $region60: #{wide_block_forward.1} parent=5 // pred_fallthru
      _
    %p1248 = scmp.le.s32.totalorder 2, %s16
    // Predicated region
    $region65: #{wide_block_forward.1} parent=5 // pred_check
      %p1249 = pneg %p1248
    $region66: #{wide_block_forward.1} parent=5 // pred_check_branch
      %1251 = sbr.rel (%p1249) target = $region68
    $region67: #{wide_block_forward.1} parent=5 // pred_region
      %s1252 = ssub.s32 %s16, 2
      // Predicated region
      $region69: #{wide_block_forward.1} parent=67 // pred_check
        %p1253 = pneg %p260
      $region70: #{wide_block_forward.1} parent=67 // pred_check_branch
        %1255 = sbr.rel (%p1253) target = $region72
      $region71: #{wide_block_forward.1} parent=67 // pred_region
        %p1256 = scmp.lt.s32.totalorder %s22, 1
        %s1257 = scalar_select %p1256, %s22, 1
        %s1258 = smul.addr %s1257, 2
        %s1259 = smul.addr %s1258, 8
        %s1260 = scalar_lea.vmem %s10, %s1259
      $region72: #{wide_block_forward.1} parent=67 // pred_fallthru
        _
    $region68: #{wide_block_forward.1} parent=5 // pred_fallthru
      _
  $region6: #{wide_block_forward.1} parent=0 // loop_footer
    %s20 = sadd.s32 1, %s16
  $region7: #{wide_block_forward.1} parent=0 // loop_footer_branch
    %15 = sbr.rel target = $region3
  $region8: #{wide_block_forward.1} parent=0 // loop_exit
    _

</llo_original>
